<compile_context>
chip_gen: v5e
topology: v5e:2x2
jax: 0.10.0
libtpu: 0.0.40
codegen_flags: <defaults>
</compile_context>

<pallas_src>
import functools

import jax
import jax.numpy as jnp
from jax.experimental import pallas as pl
from jax.experimental.pallas import tpu as pltpu

NUM_GROUPS = 32
EPS = 1e-6
VMEM_LIMIT = 64 * 1024 * 1024


def _pick_block(n, preferred):
    for b in (preferred, 1024, 512, 256, 128, 64, 32, 16, 8):
        if b <= n and n % b == 0:
            return b
    return n


# --------------------- kernel 1: GroupNorm + QKV projection -------------------
def norm_qkv_kernel(x_ref, gamma_ref, beta_ref, gmat_ref,
                    wq_ref, bq_ref, wk_ref, bk_ref, wv_ref, bv_ref,
                    q_ref, k_ref, v_ref, *, num_heads):
    """One batch element per grid step.  x_ref: (HW, C)."""
    x32 = x_ref[...].astype(jnp.float32)                          # stats in f32

    # GroupNorm stats.  gmat[c, c'] = [group(c)==group(c')] / (HW*cg), so
    # (per-channel sums) @ gmat yields per-channel, broadcast-ready E[x], E[x^2].
    sum_x = jnp.sum(x32, axis=0, keepdims=True)                    # (1, C)
    sum_x2 = jnp.sum(x32 * x32, axis=0, keepdims=True)             # (1, C)
    mean = jnp.dot(sum_x, gmat_ref[...], preferred_element_type=jnp.float32)
    ex2 = jnp.dot(sum_x2, gmat_ref[...], preferred_element_type=jnp.float32)
    var = jnp.maximum(ex2 - mean * mean, 0.0)                      # clamp: no rsqrt(<0)
    inv = jax.lax.rsqrt(var + EPS)
    xn = ((x32 - mean) * (inv * gamma_ref[...]) + beta_ref[...]).astype(jnp.bfloat16)

    # 1x1 convs == per-pixel matmuls (bf16 MXU, f32 accumulate).  Weights are
    # pre-split per head so every head writes its own (HW, hc) slab — no lane
    # concatenation / slicing relayouts.  (C**-0.5 already folded into wq/bq.)
    for h in range(num_heads):
        q_ref[h] = (jnp.dot(xn, wq_ref[h], preferred_element_type=jnp.float32)
                    + bq_ref[h]).astype(q_ref.dtype)
        k_ref[h] = (jnp.dot(xn, wk_ref[h], preferred_element_type=jnp.float32)
                    + bk_ref[h]).astype(k_ref.dtype)
        v_ref[h] = (jnp.dot(xn, wv_ref[h], preferred_element_type=jnp.float32)
                    + bv_ref[h]).astype(v_ref.dtype)


# -------------- kernel 2: flash attention + output proj + residual ------------
def attn_proj_kernel(q_ref, k_ref, v_ref, wp_ref, bp_ref, x_ref,
                     o_ref, acc_ref, *, block_k):
    """Grid = (B, n_q_tiles, num_heads); heads is the innermost reduction axis.

    q_ref : (TQ, hc)  bf16   query tile of this (batch, q-tile, head)
    k_ref : (HW, hc)  bf16   all keys of this (batch, head)
    v_ref : (HW, hc)  bf16   all values of this (batch, head)
    wp_ref: (hc, C)   bf16   this head's slice of proj_out^T
    acc_ref: (TQ, C)  f32    accumulator: x + bp + sum_h attn_h @ wp_h
    """
    h = pl.program_id(2)

    @pl.when(h == 0)
    def _init():
        acc_ref[...] = x_ref[...].astype(jnp.float32) + bp_ref[...]

    q = q_ref[...]
    tq, hc = q.shape
    hw = k_ref.shape[0]
    n_k = hw // block_k

    def kv_step(ki, carry):
        m, l, acc = carry
        start = pl.multiple_of(ki * block_k, block_k)
        kt = k_ref[pl.ds(start, block_k), :]                       # (TK, hc) bf16
        vt = v_ref[pl.ds(start, block_k), :]
        # contract last dims of both operands -> no materialized k^T (no XLU copy)
        s = jax.lax.dot_general(q, kt, (((1,), (1,)), ((), ())),
                                preferred_element_type=jnp.float32)  # (TQ, TK) f32
        m_new = jnp.maximum(m, jnp.max(s, axis=-1, keepdims=True))
        alpha = jnp.exp(m - m_new)
        p = jnp.exp(s - m_new)
        l_new = alpha * l + jnp.sum(p, axis=-1, keepdims=True)
        acc_new = alpha * acc + jnp.dot(p.astype(vt.dtype), vt,
                                        preferred_element_type=jnp.float32)
        return m_new, l_new, acc_new

    m0 = jnp.full((tq, 1), -jnp.inf, dtype=jnp.float32)
    l0 = jnp.zeros((tq, 1), dtype=jnp.float32)
    a0 = jnp.zeros((tq, hc), dtype=jnp.float32)
    m, l, acc = jax.lax.fori_loop(0, n_k, kv_step, (m0, l0, a0))

    # softmax divide on the EUP; project this head and accumulate (no concat).
    attn = (acc * pl.reciprocal(l, approx=True)).astype(jnp.bfloat16)   # (TQ, hc)
    acc_ref[...] += jnp.dot(attn, wp_ref[...], preferred_element_type=jnp.float32)

    @pl.when(h == pl.num_programs(2) - 1)
    def _finalize():
        o_ref[...] = acc_ref[...].astype(o_ref.dtype)


# --------------------------------- wrapper ------------------------------------
def attn_block(x_nchw, params, num_heads=4, block_q=512, block_k=512):
    B, C, H, W = x_nchw.shape
    assert C % NUM_GROUPS == 0, "GroupNorm(32) requires C % 32 == 0"
    assert C % num_heads == 0, "C must be divisible by num_heads"
    HW = H * W
    hc = C // num_heads
    cg = C // NUM_GROUPS

    # NCHW -> (B, HW, C): channels-last so 1x1 convs become (HW,C)@(C, .) matmuls.
    x = jnp.transpose(x_nchw, (0, 2, 3, 1)).reshape(B, HW, C)

    f32, bf16 = jnp.float32, jnp.bfloat16
    gamma = params["gamma"].reshape(1, C).astype(f32)
    beta = params["beta"].reshape(1, C).astype(f32)

    # Group-membership matrix, pre-divided by the reduction size (kept f32 so
    # the GroupNorm statistics stay accurate).
    gidx = jnp.arange(C) // cg
    gmat = (gidx[:, None] == gidx[None, :]).astype(f32) / float(HW * cg)

    scale = float(C) ** -0.5          # softmax scale, folded into wq / bq

    def w_heads(name, s=1.0):
        wt = (params[name].astype(f32) * s).T                       # (Cin, Cout)
        return jnp.transpose(wt.reshape(C, num_heads, hc), (1, 0, 2)).astype(bf16)

    def b_heads(name, s=1.0):
        return (params[name].astype(f32) * s).reshape(num_heads, 1, hc)

    wq, bq = w_heads("wq", scale), b_heads("bq", scale)
    wk, bk = w_heads("wk"), b_heads("bk")
    wv, bv = w_heads("wv"), b_heads("bv")
    # proj_out: out = sum_h attn_h @ wp^T[h*hc:(h+1)*hc, :]  (+ bp once)
    wp = params["wp"].astype(f32).T.reshape(num_heads, hc, C).astype(bf16)
    bp = params["bp"].reshape(1, C).astype(f32)

    # ---- kernel 1: GroupNorm + QKV, per-head layout (B, Hd, HW, hc) ----------
    qkv_shape = jax.ShapeDtypeStruct((B, num_heads, HW, hc), bf16)
    whole3 = lambda b: (0, 0, 0)
    q, k, v = pl.pallas_call(
        functools.partial(norm_qkv_kernel, num_heads=num_heads),
        out_shape=(qkv_shape, qkv_shape, qkv_shape),
        grid=(B,),
        in_specs=[
            pl.BlockSpec((None, HW, C), lambda b: (b, 0, 0)),        # x
            pl.BlockSpec((1, C), lambda b: (0, 0)),                  # gamma
            pl.BlockSpec((1, C), lambda b: (0, 0)),                  # beta
            pl.BlockSpec((C, C), lambda b: (0, 0)),                  # gmat / denom
            pl.BlockSpec((num_heads, C, hc), whole3),                # wq (scaled)
            pl.BlockSpec((num_heads, 1, hc), whole3),                # bq (scaled)
            pl.BlockSpec((num_heads, C, hc), whole3),                # wk
            pl.BlockSpec((num_heads, 1, hc), whole3),                # bk
            pl.BlockSpec((num_heads, C, hc), whole3),                # wv
            pl.BlockSpec((num_heads, 1, hc), whole3),                # bv
        ],
        out_specs=tuple(
            pl.BlockSpec((None, num_heads, HW, hc), lambda b: (b, 0, 0, 0))
            for _ in range(3)),
        compiler_params=pltpu.CompilerParams(
            dimension_semantics=("parallel",),
            vmem_limit_bytes=VMEM_LIMIT),
    )(x, gamma, beta, gmat, wq, bq, wk, bk, wv, bv)

    # ---- kernel 2: flash attention + output projection + residual -----------
    bq_t = _pick_block(HW, block_q)
    bk_t = _pick_block(HW, block_k)
    n_q = HW // bq_t

    out = pl.pallas_call(
        functools.partial(attn_proj_kernel, block_k=bk_t),
        out_shape=jax.ShapeDtypeStruct((B, HW, C), x.dtype),
        grid=(B, n_q, num_heads),                    # heads innermost = reduction
        in_specs=[
            pl.BlockSpec((None, None, bq_t, hc), lambda b, i, h: (b, h, i, 0)),  # q tile
            pl.BlockSpec((None, None, HW, hc), lambda b, i, h: (b, h, 0, 0)),    # k (head)
            pl.BlockSpec((None, None, HW, hc), lambda b, i, h: (b, h, 0, 0)),    # v (head)
            pl.BlockSpec((None, hc, C), lambda b, i, h: (h, 0, 0)),              # wp (head)
            pl.BlockSpec((1, C), lambda b, i, h: (0, 0)),                        # bp
            pl.BlockSpec((None, bq_t, C), lambda b, i, h: (b, i, 0)),            # x residual
        ],
        out_specs=pl.BlockSpec((None, bq_t, C), lambda b, i, h: (b, i, 0)),
        scratch_shapes=[pltpu.VMEM((bq_t, C), jnp.float32)],
        compiler_params=pltpu.CompilerParams(
            dimension_semantics=("parallel", "parallel", "arbitrary"),
            vmem_limit_bytes=VMEM_LIMIT),
    )(q, k, v, wp, bp, x)

    # (B, HW, C) -> NCHW
    return jnp.transpose(out.reshape(B, H, W, C), (0, 3, 1, 2))


# ----------------------------- pure-JAX reference -----------------------------
def ref_attn_block(x, params, num_heads=4):
    B, C, H, W = x.shape
    G = NUM_GROUPS
    cg = C // G
    gamma, beta = params["gamma"], params["beta"]

    xg = x.reshape(B, G, cg, H, W)
    mean = xg.mean(axis=(2, 3, 4), keepdims=True)
    var = ((xg - mean) ** 2).mean(axis=(2, 3, 4), keepdims=True)
    xn = ((xg - mean) / jnp.sqrt(var + EPS)).reshape(B, C, H, W)
    xn = xn * gamma[None, :, None, None] + beta[None, :, None, None]

    def conv1x1(h, w, b):
        return jnp.einsum("oc,bchw->bohw", w, h) + b[None, :, None, None]

    q = conv1x1(xn, params["wq"], params["bq"])
    k = conv1x1(xn, params["wk"], params["bk"])
    v = conv1x1(xn, params["wv"], params["bv"])

    hc = C // num_heads
    HW = H * W
    q = q.reshape(B * num_heads, hc, HW).transpose(0, 2, 1)   # (BH, HW, hc)
    k = k.reshape(B * num_heads, hc, HW)                      # (BH, hc, HW)
    v = v.reshape(B * num_heads, hc, HW)                      # (BH, hc, HW)
    w_ = jnp.einsum("bqc,bck->bqk", q, k) * (float(C) ** -0.5)
    w_ = jax.nn.softmax(w_, axis=2)
    h_ = jnp.einsum("bck,bqk->bcq", v, w_).reshape(B, C, H, W)
    return x + conv1x1(h_, params["wp"], params["bp"])


if __name__ == "__main__":
    B, C, H, W = 2, 32, 8, 8         # C must be divisible by num_groups=32
    num_heads = 4

    key = jax.random.PRNGKey(0)
    keys = jax.random.split(key, 11)
    x = jax.random.normal(keys[0], (B, C, H, W), dtype=jnp.float32)

    params = {
        "gamma": 1.0 + 0.1 * jax.random.normal(keys[1], (C,), jnp.float32),
        "beta": 0.1 * jax.random.normal(keys[2], (C,), jnp.float32),
        "wq": 0.15 * jax.random.normal(keys[3], (C, C), jnp.float32),
        "bq": 0.05 * jax.random.normal(keys[4], (C,), jnp.float32),
        "wk": 0.15 * jax.random.normal(keys[5], (C, C), jnp.float32),
        "bk": 0.05 * jax.random.normal(keys[6], (C,), jnp.float32),
        "wv": 0.15 * jax.random.normal(keys[7], (C, C), jnp.float32),
        "bv": 0.05 * jax.random.normal(keys[8], (C,), jnp.float32),
        "wp": 0.15 * jax.random.normal(keys[9], (C, C), jnp.float32),
        "bp": 0.05 * jax.random.normal(keys[10], (C,), jnp.float32),
    }

    out = attn_block(x, params, num_heads=num_heads)
    out = jax.block_until_ready(out)

    ref = jax.block_until_ready(ref_attn_block(x, params, num_heads=num_heads))
    assert out.shape == (B, C, H, W) and out.dtype == x.dtype
    # bf16 MXU operands + approx reciprocal -> compare with bf16-level tolerance.
    assert jnp.allclose(out, ref, atol=5e-2, rtol=5e-2), (
        float(jnp.max(jnp.abs(out - ref))))

    print("KERNEL_OK")
</pallas_src>

<mosaic_0001>
module attributes {stable_mosaic.version = 11 : i64} {
  func.func @norm_qkv_kernel(%arg0: i32, %arg1: memref<1x64x32xf32, #tpu.memory_space<vmem>>, %arg2: memref<1x32xf32, #tpu.memory_space<vmem>>, %arg3: memref<1x32xf32, #tpu.memory_space<vmem>>, %arg4: memref<32x32xf32, #tpu.memory_space<vmem>>, %arg5: memref<4x32x8xbf16, #tpu.memory_space<vmem>>, %arg6: memref<4x1x8xf32, #tpu.memory_space<vmem>>, %arg7: memref<4x32x8xbf16, #tpu.memory_space<vmem>>, %arg8: memref<4x1x8xf32, #tpu.memory_space<vmem>>, %arg9: memref<4x32x8xbf16, #tpu.memory_space<vmem>>, %arg10: memref<4x1x8xf32, #tpu.memory_space<vmem>>, %arg11: memref<1x4x64x8xbf16, #tpu.memory_space<vmem>>, %arg12: memref<1x4x64x8xbf16, #tpu.memory_space<vmem>>, %arg13: memref<1x4x64x8xbf16, #tpu.memory_space<vmem>>) attributes {dimension_semantics = [#tpu.dimension_semantics<parallel>], iteration_bounds = array<i64: 2>, scalar_prefetch = 0 : i64, scratch_operands = 0 : i64, tpu.core_type = #tpu.core_type<tc>, window_params = [{transform_indices = @transform_0, window_bounds = array<i64: 1, 64, 32>}, {pipeline_mode = #tpu.pipeline_mode<synchronous>, transform_indices = @transform_1, window_bounds = array<i64: 1, 32>}, {pipeline_mode = #tpu.pipeline_mode<synchronous>, transform_indices = @transform_2, window_bounds = array<i64: 1, 32>}, {pipeline_mode = #tpu.pipeline_mode<synchronous>, transform_indices = @transform_3, window_bounds = array<i64: 32, 32>}, {pipeline_mode = #tpu.pipeline_mode<synchronous>, transform_indices = @transform_4, window_bounds = array<i64: 4, 32, 8>}, {pipeline_mode = #tpu.pipeline_mode<synchronous>, transform_indices = @transform_5, window_bounds = array<i64: 4, 1, 8>}, {pipeline_mode = #tpu.pipeline_mode<synchronous>, transform_indices = @transform_6, window_bounds = array<i64: 4, 32, 8>}, {pipeline_mode = #tpu.pipeline_mode<synchronous>, transform_indices = @transform_7, window_bounds = array<i64: 4, 1, 8>}, {pipeline_mode = #tpu.pipeline_mode<synchronous>, transform_indices = @transform_8, window_bounds = array<i64: 4, 32, 8>}, {pipeline_mode = #tpu.pipeline_mode<synchronous>, transform_indices = @transform_9, window_bounds = array<i64: 4, 1, 8>}, {transform_indices = @transform_10, window_bounds = array<i64: 1, 4, 64, 8>}, {transform_indices = @transform_11, window_bounds = array<i64: 1, 4, 64, 8>}, {transform_indices = @transform_12, window_bounds = array<i64: 1, 4, 64, 8>}]} {
    %c0 = arith.constant 0 : index
    %c0_0 = arith.constant 0 : index
    %c0_1 = arith.constant 0 : index
    %0 = vector.load %arg1[%c0, %c0_0, %c0_1] : memref<1x64x32xf32, #tpu.memory_space<vmem>>, vector<1x64x32xf32>
    %1 = vector.shape_cast %0 : vector<1x64x32xf32> to vector<64x32xf32>
    %cst = arith.constant dense<0.000000e+00> : vector<32xf32>
    %2 = vector.multi_reduction <add>, %1, %cst [0] : vector<64x32xf32> to vector<32xf32>
    %3 = vector.shape_cast %2 : vector<32xf32> to vector<1x32xf32>
    %4 = arith.mulf %1, %1 : vector<64x32xf32>
    %cst_2 = arith.constant dense<0.000000e+00> : vector<32xf32>
    %5 = vector.multi_reduction <add>, %4, %cst_2 [0] : vector<64x32xf32> to vector<32xf32>
    %6 = vector.shape_cast %5 : vector<32xf32> to vector<1x32xf32>
    %c0_3 = arith.constant 0 : index
    %c0_4 = arith.constant 0 : index
    %7 = vector.load %arg4[%c0_3, %c0_4] : memref<32x32xf32, #tpu.memory_space<vmem>>, vector<32x32xf32>
    %cst_5 = arith.constant dense<0.000000e+00> : vector<1x32xf32>
    %8 = tpu.matmul %3, %7, %cst_5 {dimension_numbers = #tpu.dot_dimension_numbers<[1], [0], [0], [1], [0, 0, 1, 1], [], []>} : vector<1x32xf32>, vector<32x32xf32>, vector<1x32xf32> -> vector<1x32xf32>
    %c0_6 = arith.constant 0 : index
    %c0_7 = arith.constant 0 : index
    %9 = vector.load %arg4[%c0_6, %c0_7] : memref<32x32xf32, #tpu.memory_space<vmem>>, vector<32x32xf32>
    %cst_8 = arith.constant dense<0.000000e+00> : vector<1x32xf32>
    %10 = tpu.matmul %6, %9, %cst_8 {dimension_numbers = #tpu.dot_dimension_numbers<[1], [0], [0], [1], [0, 0, 1, 1], [], []>} : vector<1x32xf32>, vector<32x32xf32>, vector<1x32xf32> -> vector<1x32xf32>
    %11 = arith.mulf %8, %8 : vector<1x32xf32>
    %12 = arith.subf %10, %11 : vector<1x32xf32>
    %cst_9 = arith.constant 0.000000e+00 : f32
    %13 = vector.broadcast %cst_9 : f32 to vector<1x32xf32>
    %14 = arith.maximumf %12, %13 : vector<1x32xf32>
    %cst_10 = arith.constant 9.99999997E-7 : f32
    %15 = vector.broadcast %cst_10 : f32 to vector<1x32xf32>
    %16 = arith.addf %14, %15 : vector<1x32xf32>
    %17 = math.rsqrt %16 : vector<1x32xf32>
    %18 = vector.broadcast %8 : vector<1x32xf32> to vector<64x32xf32>
    %19 = arith.subf %1, %18 : vector<64x32xf32>
    %c0_11 = arith.constant 0 : index
    %c0_12 = arith.constant 0 : index
    %20 = vector.load %arg2[%c0_11, %c0_12] : memref<1x32xf32, #tpu.memory_space<vmem>>, vector<1x32xf32>
    %21 = arith.mulf %17, %20 : vector<1x32xf32>
    %22 = vector.broadcast %21 : vector<1x32xf32> to vector<64x32xf32>
    %23 = arith.mulf %19, %22 : vector<64x32xf32>
    %c0_13 = arith.constant 0 : index
    %c0_14 = arith.constant 0 : index
    %24 = vector.load %arg3[%c0_13, %c0_14] : memref<1x32xf32, #tpu.memory_space<vmem>>, vector<1x32xf32>
    %25 = vector.broadcast %24 : vector<1x32xf32> to vector<64x32xf32>
    %26 = arith.addf %23, %25 : vector<64x32xf32>
    %27 = arith.truncf %26 : vector<64x32xf32> to vector<64x32xbf16>
    %c0_15 = arith.constant 0 : index
    %c0_16 = arith.constant 0 : index
    %c0_17 = arith.constant 0 : index
    %28 = vector.load %arg5[%c0_15, %c0_16, %c0_17] : memref<4x32x8xbf16, #tpu.memory_space<vmem>>, vector<1x32x8xbf16>
    %29 = vector.shape_cast %28 : vector<1x32x8xbf16> to vector<32x8xbf16>
    %cst_18 = arith.constant dense<0.000000e+00> : vector<64x8xf32>
    %30 = tpu.matmul %27, %29, %cst_18 {dimension_numbers = #tpu.dot_dimension_numbers<[1], [0], [0], [1], [0, 0, 1, 1], [], []>} : vector<64x32xbf16>, vector<32x8xbf16>, vector<64x8xf32> -> vector<64x8xf32>
    %c0_19 = arith.constant 0 : index
    %c0_20 = arith.constant 0 : index
    %c0_21 = arith.constant 0 : index
    %31 = vector.load %arg6[%c0_19, %c0_20, %c0_21] : memref<4x1x8xf32, #tpu.memory_space<vmem>>, vector<1x1x8xf32>
    %32 = vector.shape_cast %31 : vector<1x1x8xf32> to vector<1x8xf32>
    %33 = vector.broadcast %32 : vector<1x8xf32> to vector<64x8xf32>
    %34 = arith.addf %30, %33 : vector<64x8xf32>
    %35 = arith.truncf %34 : vector<64x8xf32> to vector<64x8xbf16>
    %c0_22 = arith.constant 0 : index
    %c0_23 = arith.constant 0 : index
    %c0_24 = arith.constant 0 : index
    %c0_25 = arith.constant 0 : index
    %36 = vector.load %arg11[%c0_22, %c0_23, %c0_24, %c0_25] : memref<1x4x64x8xbf16, #tpu.memory_space<vmem>>, vector<1x1x64x8xbf16>
    %37 = vector.shape_cast %36 : vector<1x1x64x8xbf16> to vector<64x8xbf16>
    %38 = vector.shape_cast %35 : vector<64x8xbf16> to vector<1x1x64x8xbf16>
    tpu.vector_store %arg11[%c0_22, %c0_23, %c0_24, %c0_25], %38 {strides = array<i32>} : memref<1x4x64x8xbf16, #tpu.memory_space<vmem>>, vector<1x1x64x8xbf16>,
    %c0_26 = arith.constant 0 : index
    %c0_27 = arith.constant 0 : index
    %c0_28 = arith.constant 0 : index
    %39 = vector.load %arg7[%c0_26, %c0_27, %c0_28] : memref<4x32x8xbf16, #tpu.memory_space<vmem>>, vector<1x32x8xbf16>
    %40 = vector.shape_cast %39 : vector<1x32x8xbf16> to vector<32x8xbf16>
    %cst_29 = arith.constant dense<0.000000e+00> : vector<64x8xf32>
    %41 = tpu.matmul %27, %40, %cst_29 {dimension_numbers = #tpu.dot_dimension_numbers<[1], [0], [0], [1], [0, 0, 1, 1], [], []>} : vector<64x32xbf16>, vector<32x8xbf16>, vector<64x8xf32> -> vector<64x8xf32>
    %c0_30 = arith.constant 0 : index
    %c0_31 = arith.constant 0 : index
    %c0_32 = arith.constant 0 : index
    %42 = vector.load %arg8[%c0_30, %c0_31, %c0_32] : memref<4x1x8xf32, #tpu.memory_space<vmem>>, vector<1x1x8xf32>
    %43 = vector.shape_cast %42 : vector<1x1x8xf32> to vector<1x8xf32>
    %44 = vector.broadcast %43 : vector<1x8xf32> to vector<64x8xf32>
    %45 = arith.addf %41, %44 : vector<64x8xf32>
    %46 = arith.truncf %45 : vector<64x8xf32> to vector<64x8xbf16>
    %c0_33 = arith.constant 0 : index
    %c0_34 = arith.constant 0 : index
    %c0_35 = arith.constant 0 : index
    %c0_36 = arith.constant 0 : index
    %47 = vector.load %arg12[%c0_33, %c0_34, %c0_35, %c0_36] : memref<1x4x64x8xbf16, #tpu.memory_space<vmem>>, vector<1x1x64x8xbf16>
    %48 = vector.shape_cast %47 : vector<1x1x64x8xbf16> to vector<64x8xbf16>
    %49 = vector.shape_cast %46 : vector<64x8xbf16> to vector<1x1x64x8xbf16>
    tpu.vector_store %arg12[%c0_33, %c0_34, %c0_35, %c0_36], %49 {strides = array<i32>} : memref<1x4x64x8xbf16, #tpu.memory_space<vmem>>, vector<1x1x64x8xbf16>,
    %c0_37 = arith.constant 0 : index
    %c0_38 = arith.constant 0 : index
    %c0_39 = arith.constant 0 : index
    %50 = vector.load %arg9[%c0_37, %c0_38, %c0_39] : memref<4x32x8xbf16, #tpu.memory_space<vmem>>, vector<1x32x8xbf16>
    %51 = vector.shape_cast %50 : vector<1x32x8xbf16> to vector<32x8xbf16>
    %cst_40 = arith.constant dense<0.000000e+00> : vector<64x8xf32>
    %52 = tpu.matmul %27, %51, %cst_40 {dimension_numbers = #tpu.dot_dimension_numbers<[1], [0], [0], [1], [0, 0, 1, 1], [], []>} : vector<64x32xbf16>, vector<32x8xbf16>, vector<64x8xf32> -> vector<64x8xf32>
    %c0_41 = arith.constant 0 : index
    %c0_42 = arith.constant 0 : index
    %c0_43 = arith.constant 0 : index
    %53 = vector.load %arg10[%c0_41, %c0_42, %c0_43] : memref<4x1x8xf32, #tpu.memory_space<vmem>>, vector<1x1x8xf32>
    %54 = vector.shape_cast %53 : vector<1x1x8xf32> to vector<1x8xf32>
    %55 = vector.broadcast %54 : vector<1x8xf32> to vector<64x8xf32>
    %56 = arith.addf %52, %55 : vector<64x8xf32>
    %57 = arith.truncf %56 : vector<64x8xf32> to vector<64x8xbf16>
    %c0_44 = arith.constant 0 : index
    %c0_45 = arith.constant 0 : index
    %c0_46 = arith.constant 0 : index
    %c0_47 = arith.constant 0 : index
    %58 = vector.load %arg13[%c0_44, %c0_45, %c0_46, %c0_47] : memref<1x4x64x8xbf16, #tpu.memory_space<vmem>>, vector<1x1x64x8xbf16>
    %59 = vector.shape_cast %58 : vector<1x1x64x8xbf16> to vector<64x8xbf16>
    %60 = vector.shape_cast %57 : vector<64x8xbf16> to vector<1x1x64x8xbf16>
    tpu.vector_store %arg13[%c0_44, %c0_45, %c0_46, %c0_47], %60 {strides = array<i32>} : memref<1x4x64x8xbf16, #tpu.memory_space<vmem>>, vector<1x1x64x8xbf16>,
    %c1 = arith.constant 1 : index
    %c0_48 = arith.constant 0 : index
    %c0_49 = arith.constant 0 : index
    %61 = vector.load %arg5[%c1, %c0_48, %c0_49] : memref<4x32x8xbf16, #tpu.memory_space<vmem>>, vector<1x32x8xbf16>
    %62 = vector.shape_cast %61 : vector<1x32x8xbf16> to vector<32x8xbf16>
    %cst_50 = arith.constant dense<0.000000e+00> : vector<64x8xf32>
    %63 = tpu.matmul %27, %62, %cst_50 {dimension_numbers = #tpu.dot_dimension_numbers<[1], [0], [0], [1], [0, 0, 1, 1], [], []>} : vector<64x32xbf16>, vector<32x8xbf16>, vector<64x8xf32> -> vector<64x8xf32>
    %c1_51 = arith.constant 1 : index
    %c0_52 = arith.constant 0 : index
    %c0_53 = arith.constant 0 : index
    %64 = vector.load %arg6[%c1_51, %c0_52, %c0_53] : memref<4x1x8xf32, #tpu.memory_space<vmem>>, vector<1x1x8xf32>
    %65 = vector.shape_cast %64 : vector<1x1x8xf32> to vector<1x8xf32>
    %66 = vector.broadcast %65 : vector<1x8xf32> to vector<64x8xf32>
    %67 = arith.addf %63, %66 : vector<64x8xf32>
    %68 = arith.truncf %67 : vector<64x8xf32> to vector<64x8xbf16>
    %c0_54 = arith.constant 0 : index
    %c1_55 = arith.constant 1 : index
    %c0_56 = arith.constant 0 : index
    %c0_57 = arith.constant 0 : index
    %69 = vector.load %arg11[%c0_54, %c1_55, %c0_56, %c0_57] : memref<1x4x64x8xbf16, #tpu.memory_space<vmem>>, vector<1x1x64x8xbf16>
    %70 = vector.shape_cast %69 : vector<1x1x64x8xbf16> to vector<64x8xbf16>
    %71 = vector.shape_cast %68 : vector<64x8xbf16> to vector<1x1x64x8xbf16>
    tpu.vector_store %arg11[%c0_54, %c1_55, %c0_56, %c0_57], %71 {strides = array<i32>} : memref<1x4x64x8xbf16, #tpu.memory_space<vmem>>, vector<1x1x64x8xbf16>,
    %c1_58 = arith.constant 1 : index
    %c0_59 = arith.constant 0 : index
    %c0_60 = arith.constant 0 : index
    %72 = vector.load %arg7[%c1_58, %c0_59, %c0_60] : memref<4x32x8xbf16, #tpu.memory_space<vmem>>, vector<1x32x8xbf16>
    %73 = vector.shape_cast %72 : vector<1x32x8xbf16> to vector<32x8xbf16>
    %cst_61 = arith.constant dense<0.000000e+00> : vector<64x8xf32>
    %74 = tpu.matmul %27, %73, %cst_61 {dimension_numbers = #tpu.dot_dimension_numbers<[1], [0], [0], [1], [0, 0, 1, 1], [], []>} : vector<64x32xbf16>, vector<32x8xbf16>, vector<64x8xf32> -> vector<64x8xf32>
    %c1_62 = arith.constant 1 : index
    %c0_63 = arith.constant 0 : index
    %c0_64 = arith.constant 0 : index
    %75 = vector.load %arg8[%c1_62, %c0_63, %c0_64] : memref<4x1x8xf32, #tpu.memory_space<vmem>>, vector<1x1x8xf32>
    %76 = vector.shape_cast %75 : vector<1x1x8xf32> to vector<1x8xf32>
    %77 = vector.broadcast %76 : vector<1x8xf32> to vector<64x8xf32>
    %78 = arith.addf %74, %77 : vector<64x8xf32>
    %79 = arith.truncf %78 : vector<64x8xf32> to vector<64x8xbf16>
    %c0_65 = arith.constant 0 : index
    %c1_66 = arith.constant 1 : index
    %c0_67 = arith.constant 0 : index
    %c0_68 = arith.constant 0 : index
    %80 = vector.load %arg12[%c0_65, %c1_66, %c0_67, %c0_68] : memref<1x4x64x8xbf16, #tpu.memory_space<vmem>>, vector<1x1x64x8xbf16>
    %81 = vector.shape_cast %80 : vector<1x1x64x8xbf16> to vector<64x8xbf16>
    %82 = vector.shape_cast %79 : vector<64x8xbf16> to vector<1x1x64x8xbf16>
    tpu.vector_store %arg12[%c0_65, %c1_66, %c0_67, %c0_68], %82 {strides = array<i32>} : memref<1x4x64x8xbf16, #tpu.memory_space<vmem>>, vector<1x1x64x8xbf16>,
    %c1_69 = arith.constant 1 : index
    %c0_70 = arith.constant 0 : index
    %c0_71 = arith.constant 0 : index
    %83 = vector.load %arg9[%c1_69, %c0_70, %c0_71] : memref<4x32x8xbf16, #tpu.memory_space<vmem>>, vector<1x32x8xbf16>
    %84 = vector.shape_cast %83 : vector<1x32x8xbf16> to vector<32x8xbf16>
    %cst_72 = arith.constant dense<0.000000e+00> : vector<64x8xf32>
    %85 = tpu.matmul %27, %84, %cst_72 {dimension_numbers = #tpu.dot_dimension_numbers<[1], [0], [0], [1], [0, 0, 1, 1], [], []>} : vector<64x32xbf16>, vector<32x8xbf16>, vector<64x8xf32> -> vector<64x8xf32>
    %c1_73 = arith.constant 1 : index
    %c0_74 = arith.constant 0 : index
    %c0_75 = arith.constant 0 : index
    %86 = vector.load %arg10[%c1_73, %c0_74, %c0_75] : memref<4x1x8xf32, #tpu.memory_space<vmem>>, vector<1x1x8xf32>
    %87 = vector.shape_cast %86 : vector<1x1x8xf32> to vector<1x8xf32>
    %88 = vector.broadcast %87 : vector<1x8xf32> to vector<64x8xf32>
    %89 = arith.addf %85, %88 : vector<64x8xf32>
    %90 = arith.truncf %89 : vector<64x8xf32> to vector<64x8xbf16>
    %c0_76 = arith.constant 0 : index
    %c1_77 = arith.constant 1 : index
    %c0_78 = arith.constant 0 : index
    %c0_79 = arith.constant 0 : index
    %91 = vector.load %arg13[%c0_76, %c1_77, %c0_78, %c0_79] : memref<1x4x64x8xbf16, #tpu.memory_space<vmem>>, vector<1x1x64x8xbf16>
    %92 = vector.shape_cast %91 : vector<1x1x64x8xbf16> to vector<64x8xbf16>
    %93 = vector.shape_cast %90 : vector<64x8xbf16> to vector<1x1x64x8xbf16>
    tpu.vector_store %arg13[%c0_76, %c1_77, %c0_78, %c0_79], %93 {strides = array<i32>} : memref<1x4x64x8xbf16, #tpu.memory_space<vmem>>, vector<1x1x64x8xbf16>,
    %c2 = arith.constant 2 : index
    %c0_80 = arith.constant 0 : index
    %c0_81 = arith.constant 0 : index
    %94 = vector.load %arg5[%c2, %c0_80, %c0_81] : memref<4x32x8xbf16, #tpu.memory_space<vmem>>, vector<1x32x8xbf16>
    %95 = vector.shape_cast %94 : vector<1x32x8xbf16> to vector<32x8xbf16>
    %cst_82 = arith.constant dense<0.000000e+00> : vector<64x8xf32>
    %96 = tpu.matmul %27, %95, %cst_82 {dimension_numbers = #tpu.dot_dimension_numbers<[1], [0], [0], [1], [0, 0, 1, 1], [], []>} : vector<64x32xbf16>, vector<32x8xbf16>, vector<64x8xf32> -> vector<64x8xf32>
    %c2_83 = arith.constant 2 : index
    %c0_84 = arith.constant 0 : index
    %c0_85 = arith.constant 0 : index
    %97 = vector.load %arg6[%c2_83, %c0_84, %c0_85] : memref<4x1x8xf32, #tpu.memory_space<vmem>>, vector<1x1x8xf32>
    %98 = vector.shape_cast %97 : vector<1x1x8xf32> to vector<1x8xf32>
    %99 = vector.broadcast %98 : vector<1x8xf32> to vector<64x8xf32>
    %100 = arith.addf %96, %99 : vector<64x8xf32>
    %101 = arith.truncf %100 : vector<64x8xf32> to vector<64x8xbf16>
    %c0_86 = arith.constant 0 : index
    %c2_87 = arith.constant 2 : index
    %c0_88 = arith.constant 0 : index
    %c0_89 = arith.constant 0 : index
    %102 = vector.load %arg11[%c0_86, %c2_87, %c0_88, %c0_89] : memref<1x4x64x8xbf16, #tpu.memory_space<vmem>>, vector<1x1x64x8xbf16>
    %103 = vector.shape_cast %102 : vector<1x1x64x8xbf16> to vector<64x8xbf16>
    %104 = vector.shape_cast %101 : vector<64x8xbf16> to vector<1x1x64x8xbf16>
    tpu.vector_store %arg11[%c0_86, %c2_87, %c0_88, %c0_89], %104 {strides = array<i32>} : memref<1x4x64x8xbf16, #tpu.memory_space<vmem>>, vector<1x1x64x8xbf16>,
    %c2_90 = arith.constant 2 : index
    %c0_91 = arith.constant 0 : index
    %c0_92 = arith.constant 0 : index
    %105 = vector.load %arg7[%c2_90, %c0_91, %c0_92] : memref<4x32x8xbf16, #tpu.memory_space<vmem>>, vector<1x32x8xbf16>
    %106 = vector.shape_cast %105 : vector<1x32x8xbf16> to vector<32x8xbf16>
    %cst_93 = arith.constant dense<0.000000e+00> : vector<64x8xf32>
    %107 = tpu.matmul %27, %106, %cst_93 {dimension_numbers = #tpu.dot_dimension_numbers<[1], [0], [0], [1], [0, 0, 1, 1], [], []>} : vector<64x32xbf16>, vector<32x8xbf16>, vector<64x8xf32> -> vector<64x8xf32>
    %c2_94 = arith.constant 2 : index
    %c0_95 = arith.constant 0 : index
    %c0_96 = arith.constant 0 : index
    %108 = vector.load %arg8[%c2_94, %c0_95, %c0_96] : memref<4x1x8xf32, #tpu.memory_space<vmem>>, vector<1x1x8xf32>
    %109 = vector.shape_cast %108 : vector<1x1x8xf32> to vector<1x8xf32>
    %110 = vector.broadcast %109 : vector<1x8xf32> to vector<64x8xf32>
    %111 = arith.addf %107, %110 : vector<64x8xf32>
    %112 = arith.truncf %111 : vector<64x8xf32> to vector<64x8xbf16>
    %c0_97 = arith.constant 0 : index
    %c2_98 = arith.constant 2 : index
    %c0_99 = arith.constant 0 : index
    %c0_100 = arith.constant 0 : index
    %113 = vector.load %arg12[%c0_97, %c2_98, %c0_99, %c0_100] : memref<1x4x64x8xbf16, #tpu.memory_space<vmem>>, vector<1x1x64x8xbf16>
    %114 = vector.shape_cast %113 : vector<1x1x64x8xbf16> to vector<64x8xbf16>
    %115 = vector.shape_cast %112 : vector<64x8xbf16> to vector<1x1x64x8xbf16>
    tpu.vector_store %arg12[%c0_97, %c2_98, %c0_99, %c0_100], %115 {strides = array<i32>} : memref<1x4x64x8xbf16, #tpu.memory_space<vmem>>, vector<1x1x64x8xbf16>,
    %c2_101 = arith.constant 2 : index
    %c0_102 = arith.constant 0 : index
    %c0_103 = arith.constant 0 : index
    %116 = vector.load %arg9[%c2_101, %c0_102, %c0_103] : memref<4x32x8xbf16, #tpu.memory_space<vmem>>, vector<1x32x8xbf16>
    %117 = vector.shape_cast %116 : vector<1x32x8xbf16> to vector<32x8xbf16>
    %cst_104 = arith.constant dense<0.000000e+00> : vector<64x8xf32>
    %118 = tpu.matmul %27, %117, %cst_104 {dimension_numbers = #tpu.dot_dimension_numbers<[1], [0], [0], [1], [0, 0, 1, 1], [], []>} : vector<64x32xbf16>, vector<32x8xbf16>, vector<64x8xf32> -> vector<64x8xf32>
    %c2_105 = arith.constant 2 : index
    %c0_106 = arith.constant 0 : index
    %c0_107 = arith.constant 0 : index
    %119 = vector.load %arg10[%c2_105, %c0_106, %c0_107] : memref<4x1x8xf32, #tpu.memory_space<vmem>>, vector<1x1x8xf32>
    %120 = vector.shape_cast %119 : vector<1x1x8xf32> to vector<1x8xf32>
    %121 = vector.broadcast %120 : vector<1x8xf32> to vector<64x8xf32>
    %122 = arith.addf %118, %121 : vector<64x8xf32>
    %123 = arith.truncf %122 : vector<64x8xf32> to vector<64x8xbf16>
    %c0_108 = arith.constant 0 : index
    %c2_109 = arith.constant 2 : index
    %c0_110 = arith.constant 0 : index
    %c0_111 = arith.constant 0 : index
    %124 = vector.load %arg13[%c0_108, %c2_109, %c0_110, %c0_111] : memref<1x4x64x8xbf16, #tpu.memory_space<vmem>>, vector<1x1x64x8xbf16>
    %125 = vector.shape_cast %124 : vector<1x1x64x8xbf16> to vector<64x8xbf16>
    %126 = vector.shape_cast %123 : vector<64x8xbf16> to vector<1x1x64x8xbf16>
    tpu.vector_store %arg13[%c0_108, %c2_109, %c0_110, %c0_111], %126 {strides = array<i32>} : memref<1x4x64x8xbf16, #tpu.memory_space<vmem>>, vector<1x1x64x8xbf16>,
    %c3 = arith.constant 3 : index
    %c0_112 = arith.constant 0 : index
    %c0_113 = arith.constant 0 : index
    %127 = vector.load %arg5[%c3, %c0_112, %c0_113] : memref<4x32x8xbf16, #tpu.memory_space<vmem>>, vector<1x32x8xbf16>
    %128 = vector.shape_cast %127 : vector<1x32x8xbf16> to vector<32x8xbf16>
    %cst_114 = arith.constant dense<0.000000e+00> : vector<64x8xf32>
    %129 = tpu.matmul %27, %128, %cst_114 {dimension_numbers = #tpu.dot_dimension_numbers<[1], [0], [0], [1], [0, 0, 1, 1], [], []>} : vector<64x32xbf16>, vector<32x8xbf16>, vector<64x8xf32> -> vector<64x8xf32>
    %c3_115 = arith.constant 3 : index
    %c0_116 = arith.constant 0 : index
    %c0_117 = arith.constant 0 : index
    %130 = vector.load %arg6[%c3_115, %c0_116, %c0_117] : memref<4x1x8xf32, #tpu.memory_space<vmem>>, vector<1x1x8xf32>
    %131 = vector.shape_cast %130 : vector<1x1x8xf32> to vector<1x8xf32>
    %132 = vector.broadcast %131 : vector<1x8xf32> to vector<64x8xf32>
    %133 = arith.addf %129, %132 : vector<64x8xf32>
    %134 = arith.truncf %133 : vector<64x8xf32> to vector<64x8xbf16>
    %c0_118 = arith.constant 0 : index
    %c3_119 = arith.constant 3 : index
    %c0_120 = arith.constant 0 : index
    %c0_121 = arith.constant 0 : index
    %135 = vector.load %arg11[%c0_118, %c3_119, %c0_120, %c0_121] : memref<1x4x64x8xbf16, #tpu.memory_space<vmem>>, vector<1x1x64x8xbf16>
    %136 = vector.shape_cast %135 : vector<1x1x64x8xbf16> to vector<64x8xbf16>
    %137 = vector.shape_cast %134 : vector<64x8xbf16> to vector<1x1x64x8xbf16>
    tpu.vector_store %arg11[%c0_118, %c3_119, %c0_120, %c0_121], %137 {strides = array<i32>} : memref<1x4x64x8xbf16, #tpu.memory_space<vmem>>, vector<1x1x64x8xbf16>,
    %c3_122 = arith.constant 3 : index
    %c0_123 = arith.constant 0 : index
    %c0_124 = arith.constant 0 : index
    %138 = vector.load %arg7[%c3_122, %c0_123, %c0_124] : memref<4x32x8xbf16, #tpu.memory_space<vmem>>, vector<1x32x8xbf16>
    %139 = vector.shape_cast %138 : vector<1x32x8xbf16> to vector<32x8xbf16>
    %cst_125 = arith.constant dense<0.000000e+00> : vector<64x8xf32>
    %140 = tpu.matmul %27, %139, %cst_125 {dimension_numbers = #tpu.dot_dimension_numbers<[1], [0], [0], [1], [0, 0, 1, 1], [], []>} : vector<64x32xbf16>, vector<32x8xbf16>, vector<64x8xf32> -> vector<64x8xf32>
    %c3_126 = arith.constant 3 : index
    %c0_127 = arith.constant 0 : index
    %c0_128 = arith.constant 0 : index
    %141 = vector.load %arg8[%c3_126, %c0_127, %c0_128] : memref<4x1x8xf32, #tpu.memory_space<vmem>>, vector<1x1x8xf32>
    %142 = vector.shape_cast %141 : vector<1x1x8xf32> to vector<1x8xf32>
    %143 = vector.broadcast %142 : vector<1x8xf32> to vector<64x8xf32>
    %144 = arith.addf %140, %143 : vector<64x8xf32>
    %145 = arith.truncf %144 : vector<64x8xf32> to vector<64x8xbf16>
    %c0_129 = arith.constant 0 : index
    %c3_130 = arith.constant 3 : index
    %c0_131 = arith.constant 0 : index
    %c0_132 = arith.constant 0 : index
    %146 = vector.load %arg12[%c0_129, %c3_130, %c0_131, %c0_132] : memref<1x4x64x8xbf16, #tpu.memory_space<vmem>>, vector<1x1x64x8xbf16>
    %147 = vector.shape_cast %146 : vector<1x1x64x8xbf16> to vector<64x8xbf16>
    %148 = vector.shape_cast %145 : vector<64x8xbf16> to vector<1x1x64x8xbf16>
    tpu.vector_store %arg12[%c0_129, %c3_130, %c0_131, %c0_132], %148 {strides = array<i32>} : memref<1x4x64x8xbf16, #tpu.memory_space<vmem>>, vector<1x1x64x8xbf16>,
    %c3_133 = arith.constant 3 : index
    %c0_134 = arith.constant 0 : index
    %c0_135 = arith.constant 0 : index
    %149 = vector.load %arg9[%c3_133, %c0_134, %c0_135] : memref<4x32x8xbf16, #tpu.memory_space<vmem>>, vector<1x32x8xbf16>
    %150 = vector.shape_cast %149 : vector<1x32x8xbf16> to vector<32x8xbf16>
    %cst_136 = arith.constant dense<0.000000e+00> : vector<64x8xf32>
    %151 = tpu.matmul %27, %150, %cst_136 {dimension_numbers = #tpu.dot_dimension_numbers<[1], [0], [0], [1], [0, 0, 1, 1], [], []>} : vector<64x32xbf16>, vector<32x8xbf16>, vector<64x8xf32> -> vector<64x8xf32>
    %c3_137 = arith.constant 3 : index
    %c0_138 = arith.constant 0 : index
    %c0_139 = arith.constant 0 : index
    %152 = vector.load %arg10[%c3_137, %c0_138, %c0_139] : memref<4x1x8xf32, #tpu.memory_space<vmem>>, vector<1x1x8xf32>
    %153 = vector.shape_cast %152 : vector<1x1x8xf32> to vector<1x8xf32>
    %154 = vector.broadcast %153 : vector<1x8xf32> to vector<64x8xf32>
    %155 = arith.addf %151, %154 : vector<64x8xf32>
    %156 = arith.truncf %155 : vector<64x8xf32> to vector<64x8xbf16>
    %c0_140 = arith.constant 0 : index
    %c3_141 = arith.constant 3 : index
    %c0_142 = arith.constant 0 : index
    %c0_143 = arith.constant 0 : index
    %157 = vector.load %arg13[%c0_140, %c3_141, %c0_142, %c0_143] : memref<1x4x64x8xbf16, #tpu.memory_space<vmem>>, vector<1x1x64x8xbf16>
    %158 = vector.shape_cast %157 : vector<1x1x64x8xbf16> to vector<64x8xbf16>
    %159 = vector.shape_cast %156 : vector<64x8xbf16> to vector<1x1x64x8xbf16>
    tpu.vector_store %arg13[%c0_140, %c3_141, %c0_142, %c0_143], %159 {strides = array<i32>} : memref<1x4x64x8xbf16, #tpu.memory_space<vmem>>, vector<1x1x64x8xbf16>,
    return
  }
  func.func @transform_0(%arg0: i32) -> (i32, i32, i32) {
    %c0_i32 = arith.constant 0 : i32
    %c0_i32_0 = arith.constant 0 : i32
    %c0_i32_1 = arith.constant 0 : i32
    return %arg0, %c0_i32, %c0_i32_0 : i32, i32, i32
  }
  func.func @transform_1(%arg0: i32) -> (i32, i32) {
    %c0_i32 = arith.constant 0 : i32
    %c0_i32_0 = arith.constant 0 : i32
    %c0_i32_1 = arith.constant 0 : i32
    return %c0_i32, %c0_i32_0 : i32, i32
  }
  func.func @transform_2(%arg0: i32) -> (i32, i32) {
    %c0_i32 = arith.constant 0 : i32
    %c0_i32_0 = arith.constant 0 : i32
    %c0_i32_1 = arith.constant 0 : i32
    return %c0_i32, %c0_i32_0 : i32, i32
  }
  func.func @transform_3(%arg0: i32) -> (i32, i32) {
    %c0_i32 = arith.constant 0 : i32
    %c0_i32_0 = arith.constant 0 : i32
    %c0_i32_1 = arith.constant 0 : i32
    return %c0_i32, %c0_i32_0 : i32, i32
  }
  func.func @transform_4(%arg0: i32) -> (i32, i32, i32) {
    %c0_i32 = arith.constant 0 : i32
    %c0_i32_0 = arith.constant 0 : i32
    %c0_i32_1 = arith.constant 0 : i32
    %c0_i32_2 = arith.constant 0 : i32
    return %c0_i32, %c0_i32_0, %c0_i32_1 : i32, i32, i32
  }
  func.func @transform_5(%arg0: i32) -> (i32, i32, i32) {
    %c0_i32 = arith.constant 0 : i32
    %c0_i32_0 = arith.constant 0 : i32
    %c0_i32_1 = arith.constant 0 : i32
    %c0_i32_2 = arith.constant 0 : i32
    return %c0_i32, %c0_i32_0, %c0_i32_1 : i32, i32, i32
  }
  func.func @transform_6(%arg0: i32) -> (i32, i32, i32) {
    %c0_i32 = arith.constant 0 : i32
    %c0_i32_0 = arith.constant 0 : i32
    %c0_i32_1 = arith.constant 0 : i32
    %c0_i32_2 = arith.constant 0 : i32
    return %c0_i32, %c0_i32_0, %c0_i32_1 : i32, i32, i32
  }
  func.func @transform_7(%arg0: i32) -> (i32, i32, i32) {
    %c0_i32 = arith.constant 0 : i32
    %c0_i32_0 = arith.constant 0 : i32
    %c0_i32_1 = arith.constant 0 : i32
    %c0_i32_2 = arith.constant 0 : i32
    return %c0_i32, %c0_i32_0, %c0_i32_1 : i32, i32, i32
  }
  func.func @transform_8(%arg0: i32) -> (i32, i32, i32) {
    %c0_i32 = arith.constant 0 : i32
    %c0_i32_0 = arith.constant 0 : i32
    %c0_i32_1 = arith.constant 0 : i32
    %c0_i32_2 = arith.constant 0 : i32
    return %c0_i32, %c0_i32_0, %c0_i32_1 : i32, i32, i32
  }
  func.func @transform_9(%arg0: i32) -> (i32, i32, i32) {
    %c0_i32 = arith.constant 0 : i32
    %c0_i32_0 = arith.constant 0 : i32
    %c0_i32_1 = arith.constant 0 : i32
    %c0_i32_2 = arith.constant 0 : i32
    return %c0_i32, %c0_i32_0, %c0_i32_1 : i32, i32, i32
  }
  func.func @transform_10(%arg0: i32) -> (i32, i32, i32, i32) {
    %c0_i32 = arith.constant 0 : i32
    %c0_i32_0 = arith.constant 0 : i32
    %c0_i32_1 = arith.constant 0 : i32
    %c0_i32_2 = arith.constant 0 : i32
    return %arg0, %c0_i32, %c0_i32_0, %c0_i32_1 : i32, i32, i32, i32
  }
  func.func @transform_11(%arg0: i32) -> (i32, i32, i32, i32) {
    %c0_i32 = arith.constant 0 : i32
    %c0_i32_0 = arith.constant 0 : i32
    %c0_i32_1 = arith.constant 0 : i32
    %c0_i32_2 = arith.constant 0 : i32
    return %arg0, %c0_i32, %c0_i32_0, %c0_i32_1 : i32, i32, i32, i32
  }
  func.func @transform_12(%arg0: i32) -> (i32, i32, i32, i32) {
    %c0_i32 = arith.constant 0 : i32
    %c0_i32_0 = arith.constant 0 : i32
    %c0_i32_1 = arith.constant 0 : i32
    %c0_i32_2 = arith.constant 0 : i32
    return %arg0, %c0_i32, %c0_i32_0, %c0_i32_1 : i32, i32, i32, i32
  }
}

</mosaic_0001>

<llo_original>
// kernel: tpu_custom_call.1
$region0: #{tpu_custom_call.1}
  #allocation0 [shape = 'u32[]', space=smem, size = 0x4, offset = 0x4, fixed_abs, tag = 'smem constant byte address 0x4 - core index']
  #allocation1 [shape = 'u32[72,128]{1,0:T(1,128)}', space=vmem, size = 0x9000, scoped, tag = 'internal scratch']
  %s0 = inlined_call_operand.vmem [shape: f32[2,64,32], index: 0, kind: input, shape index: {}]
  %s1 = inlined_call_operand.vmem [shape: f32[1,32], index: 1, kind: input, shape index: {}]
  %s2 = inlined_call_operand.vmem [shape: f32[1,32], index: 2, kind: input, shape index: {}]
  %s3 = inlined_call_operand.vmem [shape: f32[32,32], index: 3, kind: input, shape index: {}]
  %s4 = inlined_call_operand.vmem [shape: bf16[4,32,8], index: 4, kind: input, shape index: {}]
  %s5 = inlined_call_operand.vmem [shape: f32[4,1,8], index: 5, kind: input, shape index: {}]
  %s6 = inlined_call_operand.vmem [shape: bf16[4,32,8], index: 6, kind: input, shape index: {}]
  %s7 = inlined_call_operand.vmem [shape: f32[4,1,8], index: 7, kind: input, shape index: {}]
  %s8 = inlined_call_operand.vmem [shape: bf16[4,32,8], index: 8, kind: input, shape index: {}]
  %s9 = inlined_call_operand.vmem [shape: f32[4,1,8], index: 9, kind: input, shape index: {}]
  %s10 = inlined_call_operand.vmem [shape: bf16[2,4,64,8], index: 10, kind: output, shape index: {0}]
  %s11 = inlined_call_operand.vmem [shape: bf16[2,4,64,8], index: 11, kind: output, shape index: {1}]
  %s12 = inlined_call_operand.vmem [shape: bf16[2,4,64,8], index: 12, kind: output, shape index: {2}]
  %13 = xla_tuple %s10, %s11, %s12
  %s14 = sld [smem:[#allocation0]]
  $region89: #{tpu_custom_call.1} parent=0
    _
  %s16 = ssub.s32 1, %s14
  %s17 = scalar_select 0, %s16, %s14
  loop: start=0, step=1, limit=4
  $region2: #{tpu_custom_call.1} parent=0 // loop_pre_header
    _
  $region3: #{tpu_custom_call.1} parent=0 // loop_header
    %s19 = sphi 0, %s23
    %p20 = scmp.ge.s32.totalorder %s19, 4
    %s29 = sphi 0, %s31
    %s32 = sphi 0, %s29
    %s33 = sphi 0, %s32
    %s49 = sphi 0, %s33
    %s53 = sphi 0, %s53
    %s55 = sphi 0, %s53
    %s56 = sphi 0, %s55
    %s70 = sphi 0, %s56
    %s74 = sphi 0, %s74
    %s76 = sphi 0, %s74
    %s77 = sphi 0, %s76
    %s91 = sphi 0, %s77
    %s95 = sphi 0, %s95
    %s97 = sphi 0, %s95
    %s98 = sphi 0, %s97
    %s112 = sphi 0, %s98
    %s116 = sphi 0, %s116
    %s118 = sphi 0, %s116
    %s119 = sphi 0, %s118
    %s133 = sphi 0, %s119
    %s137 = sphi 0, %s137
    %s139 = sphi 0, %s137
    %s140 = sphi 0, %s139
    %s154 = sphi 0, %s140
    %s158 = sphi 0, %s158
    %s160 = sphi 0, %s158
    %s161 = sphi 0, %s160
    %s175 = sphi 0, %s161
    %s179 = sphi 0, %s179
    %s181 = sphi 0, %s179
    %s182 = sphi 0, %s181
    %s196 = sphi 0, %s182
    %s200 = sphi 0, %s200
    %s202 = sphi 0, %s200
    %s203 = sphi 0, %s202
    %s217 = sphi 0, %s203
    %s221 = sphi 0, %s221
    %s223 = sphi 0, %s221
    %s224 = sphi 0, %s223
    %s238 = sphi 0, %s224
    %s244 = sphi 0, %s246
    %s247 = sphi 0, %s244
    %s248 = sphi 0, %s247
    %s264 = sphi 0, %s248
    %s270 = sphi 0, %s272
    %s273 = sphi 0, %s270
    %s274 = sphi 0, %s273
    %s290 = sphi 0, %s274
    %s296 = sphi 0, %s298
    %s299 = sphi 0, %s296
    %s300 = sphi 0, %s299
    %s316 = sphi 0, %s300
  $region4: #{tpu_custom_call.1} parent=0 // loop_header_branch
    %22 = sbr.rel (%p20) target = $region8
  $region5: #{tpu_custom_call.1} parent=0 // loop_body
    %s24 = ssub.s32 %s19, 1
    %s25 = ssub.s32 %s19, 2
    %s26 = sadd.s32 %s19, 1
    %s27 = ssub.s32 %s19, %s26
    %p28 = scmp.eq.s32.totalorder %s27, 0
    %s30 = sadd.s32 %s29, 1
    %s31 = scalar_select %p28, %s29, %s30
    %p34 = pneg %p28
    %p35 = scmp.eq.s32.totalorder %s19, 1
    %p36 = por %p34, %p35
    %p37 = scmp.ne.s32.totalorder %s29, %s32
    %p38 = scmp.eq.s32.totalorder %s19, 0
    %p39 = por %p37, %p38
    %p40 = scmp.ne.s32.totalorder %s29, %s32
    %p41 = scmp.eq.s32.totalorder %s24, 1
    %p42 = por %p40, %p41
    %p43 = scmp.ne.s32.totalorder %s32, %s33
    %p44 = scmp.eq.s32.totalorder %s24, 0
    %p45 = por %p43, %p44
    %p46 = scmp.ne.s32.totalorder %s32, %s33
    %p47 = scmp.eq.s32.totalorder %s25, 1
    %p48 = por %p46, %p47
    %p50 = scmp.ne.s32.totalorder %s33, %s49
    %p51 = scmp.eq.s32.totalorder %s25, 0
    %p52 = por %p50, %p51
    %s54 = sadd.s32 %s53, 1
    %p57 = scmp.eq.s32.totalorder %s19, 1
    %p58 = scmp.ne.s32.totalorder %s53, %s55
    %p59 = scmp.eq.s32.totalorder %s19, 0
    %p60 = por %p58, %p59
    %p61 = scmp.ne.s32.totalorder %s53, %s55
    %p62 = scmp.eq.s32.totalorder %s24, 1
    %p63 = por %p61, %p62
    %p64 = scmp.ne.s32.totalorder %s55, %s56
    %p65 = scmp.eq.s32.totalorder %s24, 0
    %p66 = por %p64, %p65
    %p67 = scmp.ne.s32.totalorder %s55, %s56
    %p68 = scmp.eq.s32.totalorder %s25, 1
    %p69 = por %p67, %p68
    %p71 = scmp.ne.s32.totalorder %s56, %s70
    %p72 = scmp.eq.s32.totalorder %s25, 0
    %p73 = por %p71, %p72
    %s75 = sadd.s32 %s74, 1
    %p78 = scmp.eq.s32.totalorder %s19, 1
    %p79 = scmp.ne.s32.totalorder %s74, %s76
    %p80 = scmp.eq.s32.totalorder %s19, 0
    %p81 = por %p79, %p80
    %p82 = scmp.ne.s32.totalorder %s74, %s76
    %p83 = scmp.eq.s32.totalorder %s24, 1
    %p84 = por %p82, %p83
    %p85 = scmp.ne.s32.totalorder %s76, %s77
    %p86 = scmp.eq.s32.totalorder %s24, 0
    %p87 = por %p85, %p86
    %p88 = scmp.ne.s32.totalorder %s76, %s77
    %p89 = scmp.eq.s32.totalorder %s25, 1
    %p90 = por %p88, %p89
    %p92 = scmp.ne.s32.totalorder %s77, %s91
    %p93 = scmp.eq.s32.totalorder %s25, 0
    %p94 = por %p92, %p93
    %s96 = sadd.s32 %s95, 1
    %p99 = scmp.eq.s32.totalorder %s19, 1
    %p100 = scmp.ne.s32.totalorder %s95, %s97
    %p101 = scmp.eq.s32.totalorder %s19, 0
    %p102 = por %p100, %p101
    %p103 = scmp.ne.s32.totalorder %s95, %s97
    %p104 = scmp.eq.s32.totalorder %s24, 1
    %p105 = por %p103, %p104
    %p106 = scmp.ne.s32.totalorder %s97, %s98
    %p107 = scmp.eq.s32.totalorder %s24, 0
    %p108 = por %p106, %p107
    %p109 = scmp.ne.s32.totalorder %s97, %s98
    %p110 = scmp.eq.s32.totalorder %s25, 1
    %p111 = por %p109, %p110
    %p113 = scmp.ne.s32.totalorder %s98, %s112
    %p114 = scmp.eq.s32.totalorder %s25, 0
    %p115 = por %p113, %p114
    %s117 = sadd.s32 %s116, 1
    %p120 = scmp.eq.s32.totalorder %s19, 1
    %p121 = scmp.ne.s32.totalorder %s116, %s118
    %p122 = scmp.eq.s32.totalorder %s19, 0
    %p123 = por %p121, %p122
    %p124 = scmp.ne.s32.totalorder %s116, %s118
    %p125 = scmp.eq.s32.totalorder %s24, 1
    %p126 = por %p124, %p125
    %p127 = scmp.ne.s32.totalorder %s118, %s119
    %p128 = scmp.eq.s32.totalorder %s24, 0
    %p129 = por %p127, %p128
    %p130 = scmp.ne.s32.totalorder %s118, %s119
    %p131 = scmp.eq.s32.totalorder %s25, 1
    %p132 = por %p130, %p131
    %p134 = scmp.ne.s32.totalorder %s119, %s133
    %p135 = scmp.eq.s32.totalorder %s25, 0
    %p136 = por %p134, %p135
    %s138 = sadd.s32 %s137, 1
    %p141 = scmp.eq.s32.totalorder %s19, 1
    %p142 = scmp.ne.s32.totalorder %s137, %s139
    %p143 = scmp.eq.s32.totalorder %s19, 0
    %p144 = por %p142, %p143
    %p145 = scmp.ne.s32.totalorder %s137, %s139
    %p146 = scmp.eq.s32.totalorder %s24, 1
    %p147 = por %p145, %p146
    %p148 = scmp.ne.s32.totalorder %s139, %s140
    %p149 = scmp.eq.s32.totalorder %s24, 0
    %p150 = por %p148, %p149
    %p151 = scmp.ne.s32.totalorder %s139, %s140
    %p152 = scmp.eq.s32.totalorder %s25, 1
    %p153 = por %p151, %p152
    %p155 = scmp.ne.s32.totalorder %s140, %s154
    %p156 = scmp.eq.s32.totalorder %s25, 0
    %p157 = por %p155, %p156
    %s159 = sadd.s32 %s158, 1
    %p162 = scmp.eq.s32.totalorder %s19, 1
    %p163 = scmp.ne.s32.totalorder %s158, %s160
    %p164 = scmp.eq.s32.totalorder %s19, 0
    %p165 = por %p163, %p164
    %p166 = scmp.ne.s32.totalorder %s158, %s160
    %p167 = scmp.eq.s32.totalorder %s24, 1
    %p168 = por %p166, %p167
    %p169 = scmp.ne.s32.totalorder %s160, %s161
    %p170 = scmp.eq.s32.totalorder %s24, 0
    %p171 = por %p169, %p170
    %p172 = scmp.ne.s32.totalorder %s160, %s161
    %p173 = scmp.eq.s32.totalorder %s25, 1
    %p174 = por %p172, %p173
    %p176 = scmp.ne.s32.totalorder %s161, %s175
    %p177 = scmp.eq.s32.totalorder %s25, 0
    %p178 = por %p176, %p177
    %s180 = sadd.s32 %s179, 1
    %p183 = scmp.eq.s32.totalorder %s19, 1
    %p184 = scmp.ne.s32.totalorder %s179, %s181
    %p185 = scmp.eq.s32.totalorder %s19, 0
    %p186 = por %p184, %p185
    %p187 = scmp.ne.s32.totalorder %s179, %s181
    %p188 = scmp.eq.s32.totalorder %s24, 1
    %p189 = por %p187, %p188
    %p190 = scmp.ne.s32.totalorder %s181, %s182
    %p191 = scmp.eq.s32.totalorder %s24, 0
    %p192 = por %p190, %p191
    %p193 = scmp.ne.s32.totalorder %s181, %s182
    %p194 = scmp.eq.s32.totalorder %s25, 1
    %p195 = por %p193, %p194
    %p197 = scmp.ne.s32.totalorder %s182, %s196
    %p198 = scmp.eq.s32.totalorder %s25, 0
    %p199 = por %p197, %p198
    %s201 = sadd.s32 %s200, 1
    %p204 = scmp.eq.s32.totalorder %s19, 1
    %p205 = scmp.ne.s32.totalorder %s200, %s202
    %p206 = scmp.eq.s32.totalorder %s19, 0
    %p207 = por %p205, %p206
    %p208 = scmp.ne.s32.totalorder %s200, %s202
    %p209 = scmp.eq.s32.totalorder %s24, 1
    %p210 = por %p208, %p209
    %p211 = scmp.ne.s32.totalorder %s202, %s203
    %p212 = scmp.eq.s32.totalorder %s24, 0
    %p213 = por %p211, %p212
    %p214 = scmp.ne.s32.totalorder %s202, %s203
    %p215 = scmp.eq.s32.totalorder %s25, 1
    %p216 = por %p214, %p215
    %p218 = scmp.ne.s32.totalorder %s203, %s217
    %p219 = scmp.eq.s32.totalorder %s25, 0
    %p220 = por %p218, %p219
    %s222 = sadd.s32 %s221, 1
    %p225 = scmp.eq.s32.totalorder %s19, 1
    %p226 = scmp.ne.s32.totalorder %s221, %s223
    %p227 = scmp.eq.s32.totalorder %s19, 0
    %p228 = por %p226, %p227
    %p229 = scmp.ne.s32.totalorder %s221, %s223
    %p230 = scmp.eq.s32.totalorder %s24, 1
    %p231 = por %p229, %p230
    %p232 = scmp.ne.s32.totalorder %s223, %s224
    %p233 = scmp.eq.s32.totalorder %s24, 0
    %p234 = por %p232, %p233
    %p235 = scmp.ne.s32.totalorder %s223, %s224
    %p236 = scmp.eq.s32.totalorder %s25, 1
    %p237 = por %p235, %p236
    %p239 = scmp.ne.s32.totalorder %s224, %s238
    %p240 = scmp.eq.s32.totalorder %s25, 0
    %p241 = por %p239, %p240
    %s242 = ssub.s32 %s19, %s26
    %p243 = scmp.eq.s32.totalorder %s242, 0
    %s245 = sadd.s32 %s244, 1
    %s246 = scalar_select %p243, %s244, %s245
    %p249 = pneg %p243
    %p250 = scmp.eq.s32.totalorder %s19, 1
    %p251 = por %p249, %p250
    %p252 = scmp.ne.s32.totalorder %s244, %s247
    %p253 = scmp.eq.s32.totalorder %s19, 0
    %p254 = por %p252, %p253
    %p255 = scmp.ne.s32.totalorder %s244, %s247
    %p256 = scmp.eq.s32.totalorder %s24, 1
    %p257 = por %p255, %p256
    %p258 = scmp.ne.s32.totalorder %s247, %s248
    %p259 = scmp.eq.s32.totalorder %s24, 0
    %p260 = por %p258, %p259
    %p261 = scmp.ne.s32.totalorder %s247, %s248
    %p262 = scmp.eq.s32.totalorder %s25, 1
    %p263 = por %p261, %p262
    %p265 = scmp.ne.s32.totalorder %s248, %s264
    %p266 = scmp.eq.s32.totalorder %s25, 0
    %p267 = por %p265, %p266
    %s268 = ssub.s32 %s19, %s26
    %p269 = scmp.eq.s32.totalorder %s268, 0
    %s271 = sadd.s32 %s270, 1
    %s272 = scalar_select %p269, %s270, %s271
    %p275 = pneg %p269
    %p276 = scmp.eq.s32.totalorder %s19, 1
    %p277 = por %p275, %p276
    %p278 = scmp.ne.s32.totalorder %s270, %s273
    %p279 = scmp.eq.s32.totalorder %s19, 0
    %p280 = por %p278, %p279
    %p281 = scmp.ne.s32.totalorder %s270, %s273
    %p282 = scmp.eq.s32.totalorder %s24, 1
    %p283 = por %p281, %p282
    %p284 = scmp.ne.s32.totalorder %s273, %s274
    %p285 = scmp.eq.s32.totalorder %s24, 0
    %p286 = por %p284, %p285
    %p287 = scmp.ne.s32.totalorder %s273, %s274
    %p288 = scmp.eq.s32.totalorder %s25, 1
    %p289 = por %p287, %p288
    %p291 = scmp.ne.s32.totalorder %s274, %s290
    %p292 = scmp.eq.s32.totalorder %s25, 0
    %p293 = por %p291, %p292
    %s294 = ssub.s32 %s19, %s26
    %p295 = scmp.eq.s32.totalorder %s294, 0
    %s297 = sadd.s32 %s296, 1
    %s298 = scalar_select %p295, %s296, %s297
    %p301 = pneg %p295
    %p302 = scmp.eq.s32.totalorder %s19, 1
    %p303 = por %p301, %p302
    %p304 = scmp.ne.s32.totalorder %s296, %s299
    %p305 = scmp.eq.s32.totalorder %s19, 0
    %p306 = por %p304, %p305
    %p307 = scmp.ne.s32.totalorder %s296, %s299
    %p308 = scmp.eq.s32.totalorder %s24, 1
    %p309 = por %p307, %p308
    %p310 = scmp.ne.s32.totalorder %s299, %s300
    %p311 = scmp.eq.s32.totalorder %s24, 0
    %p312 = por %p310, %p311
    %p313 = scmp.ne.s32.totalorder %s299, %s300
    %p314 = scmp.eq.s32.totalorder %s25, 1
    %p315 = por %p313, %p314
    %p317 = scmp.ne.s32.totalorder %s300, %s316
    %p318 = scmp.eq.s32.totalorder %s25, 0
    %p319 = por %p317, %p318
    %p320 = scmp.le.s32.totalorder 1, %s19
    %p321 = scmp.lt.s32.totalorder %s19, 3
    %p322 = pnand %p320, %p321
    %p323 = pneg %p322
    // Predicated region
    $region9: #{tpu_custom_call.1} parent=5 // pred_check
      _
    $region10: #{tpu_custom_call.1} parent=5 // pred_check_branch
      %325 = sbr.rel (%p322) target = $region12
    $region11: #{tpu_custom_call.1} parent=5 // pred_region
      %s326 = ssub.s32 %s19, 1
      // Predicated region
      $region13: #{tpu_custom_call.1} parent=11 // pred_check
        %p327 = pneg %p66
      $region14: #{tpu_custom_call.1} parent=11 // pred_check_branch
        %329 = sbr.rel (%p327) target = $region16
      $region15: #{tpu_custom_call.1} parent=11 // pred_region
        _
      $region16: #{tpu_custom_call.1} parent=11 // pred_fallthru
        _
      // Predicated region
      $region17: #{tpu_custom_call.1} parent=11 // pred_check
        %p330 = pneg %p87
      $region18: #{tpu_custom_call.1} parent=11 // pred_check_branch
        %332 = sbr.rel (%p330) target = $region20
      $region19: #{tpu_custom_call.1} parent=11 // pred_region
        _
      $region20: #{tpu_custom_call.1} parent=11 // pred_fallthru
        _
      // Predicated region
      $region21: #{tpu_custom_call.1} parent=11 // pred_check
        %p333 = pneg %p108
      $region22: #{tpu_custom_call.1} parent=11 // pred_check_branch
        %335 = sbr.rel (%p333) target = $region24
      $region23: #{tpu_custom_call.1} parent=11 // pred_region
        _
      $region24: #{tpu_custom_call.1} parent=11 // pred_fallthru
        _
      // Predicated region
      $region25: #{tpu_custom_call.1} parent=11 // pred_check
        %p336 = pneg %p129
      $region26: #{tpu_custom_call.1} parent=11 // pred_check_branch
        %338 = sbr.rel (%p336) target = $region28
      $region27: #{tpu_custom_call.1} parent=11 // pred_region
        _
      $region28: #{tpu_custom_call.1} parent=11 // pred_fallthru
        _
      // Predicated region
      $region29: #{tpu_custom_call.1} parent=11 // pred_check
        %p339 = pneg %p150
      $region30: #{tpu_custom_call.1} parent=11 // pred_check_branch
        %341 = sbr.rel (%p339) target = $region32
      $region31: #{tpu_custom_call.1} parent=11 // pred_region
        _
      $region32: #{tpu_custom_call.1} parent=11 // pred_fallthru
        _
      // Predicated region
      $region33: #{tpu_custom_call.1} parent=11 // pred_check
        %p342 = pneg %p171
      $region34: #{tpu_custom_call.1} parent=11 // pred_check_branch
        %344 = sbr.rel (%p342) target = $region36
      $region35: #{tpu_custom_call.1} parent=11 // pred_region
        _
      $region36: #{tpu_custom_call.1} parent=11 // pred_fallthru
        _
      // Predicated region
      $region37: #{tpu_custom_call.1} parent=11 // pred_check
        %p345 = pneg %p192
      $region38: #{tpu_custom_call.1} parent=11 // pred_check_branch
        %347 = sbr.rel (%p345) target = $region40
      $region39: #{tpu_custom_call.1} parent=11 // pred_region
        _
      $region40: #{tpu_custom_call.1} parent=11 // pred_fallthru
        _
      // Predicated region
      $region41: #{tpu_custom_call.1} parent=11 // pred_check
        %p348 = pneg %p213
      $region42: #{tpu_custom_call.1} parent=11 // pred_check_branch
        %350 = sbr.rel (%p348) target = $region44
      $region43: #{tpu_custom_call.1} parent=11 // pred_region
        _
      $region44: #{tpu_custom_call.1} parent=11 // pred_fallthru
        _
      // Predicated region
      $region45: #{tpu_custom_call.1} parent=11 // pred_check
        %p351 = pneg %p234
      $region46: #{tpu_custom_call.1} parent=11 // pred_check_branch
        %353 = sbr.rel (%p351) target = $region48
      $region47: #{tpu_custom_call.1} parent=11 // pred_region
        _
      $region48: #{tpu_custom_call.1} parent=11 // pred_fallthru
        _
    $region12: #{tpu_custom_call.1} parent=5 // pred_fallthru
      _
    %p354 = scmp.lt.s32.totalorder %s19, 2
    // Predicated region
    $region49: #{tpu_custom_call.1} parent=5 // pred_check
      %p355 = pneg %p354
    $region50: #{tpu_custom_call.1} parent=5 // pred_check_branch
      %357 = sbr.rel (%p355) target = $region52
    $region51: #{tpu_custom_call.1} parent=5 // pred_region
      // Predicated region
      $region53: #{tpu_custom_call.1} parent=51 // pred_check
        %p358 = pneg %p39
      $region54: #{tpu_custom_call.1} parent=51 // pred_check_branch
        %360 = sbr.rel (%p358) target = $region56
      $region55: #{tpu_custom_call.1} parent=51 // pred_region
        %p361 = scmp.lt.s32.totalorder %s19, 1
        %s362 = scalar_select %p361, %s19, 1
        %s363 = smul.addr %s362, 8
        %s364 = smul.addr %s363, 8
        %s365 = scalar_lea.vmem %s0, %s364
      $region56: #{tpu_custom_call.1} parent=51 // pred_fallthru
        _
    $region52: #{tpu_custom_call.1} parent=5 // pred_fallthru
      _
    %p366 = scmp.le.s32.totalorder 1, %s19
    %p367 = scmp.lt.s32.totalorder %s19, 3
    %p368 = pnand %p366, %p367
    %p369 = pneg %p368
    // Predicated region
    $region57: #{tpu_custom_call.1} parent=5 // pred_check
      _
    $region58: #{tpu_custom_call.1} parent=5 // pred_check_branch
      %371 = sbr.rel (%p368) target = $region60
    $region59: #{tpu_custom_call.1} parent=5 // pred_region
      %s372 = ssub.s32 %s19, 1
      %p373 = scmp.lt.s32.totalorder %s24, 1
      %s374 = scalar_select %p373, %s24, 1
      %s375 = smul.addr %s374, 8
      %s376 = smul.addr %s375, 8
      %s377 = scalar_lea.vmem %s0, %s376
      %p378 = pneg %p45
      %p379 = pneg %p42
      %p380 = pneg %p66
      %p381 = pneg %p63
      %p382 = pneg %p87
      %p383 = pneg %p84
      %p384 = pneg %p108
      %p385 = pneg %p105
      %p386 = pneg %p129
      %p387 = pneg %p126
      %p388 = pneg %p150
      %p389 = pneg %p147
      %p390 = pneg %p171
      %p391 = pneg %p168
      %p392 = pneg %p192
      %p393 = pneg %p189
      %p394 = pneg %p213
      %p395 = pneg %p210
      %p396 = pneg %p234
      %p397 = pneg %p231
      %p398 = pneg %p260
      %p399 = pneg %p257
      %p400 = scmp.lt.s32.totalorder %s24, 1
      %s401 = scalar_select %p400, %s24, 1
      %s402 = smul.addr %s401, 32
      %s403 = smul.addr %s402, 4
      %s404 = scalar_lea.vmem %s10, %s403
      %p405 = pneg %p286
      %p406 = pneg %p283
      %p407 = scmp.lt.s32.totalorder %s24, 1
      %s408 = scalar_select %p407, %s24, 1
      %s409 = smul.addr %s408, 32
      %s410 = smul.addr %s409, 4
      %s411 = scalar_lea.vmem %s11, %s410
      %p412 = pneg %p312
      %p413 = pneg %p309
      %p414 = scmp.lt.s32.totalorder %s24, 1
      %s415 = scalar_select %p414, %s24, 1
      %s416 = smul.addr %s415, 32
      %s417 = smul.addr %s416, 4
      %s418 = scalar_lea.vmem %s12, %s417
      %p419 = scmp.lt.s32.totalorder %s24, 1
      %s420 = scalar_select %p419, %s24, 1
      %s421 = smul.addr %s420, 8
      %s422 = smul.addr %s421, 8
      %s423 = scalar_lea.vmem %s0, %s422
      %p424 = scmp.lt.s32.totalorder %s24, 1
      %s425 = scalar_select %p424, %s24, 1
      %s426 = smul.addr %s425, 32
      %s427 = smul.addr %s426, 4
      %s428 = scalar_lea.vmem %s10, %s427
      %p429 = scmp.lt.s32.totalorder %s24, 1
      %s430 = scalar_select %p429, %s24, 1
      %s431 = smul.addr %s430, 32
      %s432 = smul.addr %s431, 4
      %s433 = scalar_lea.vmem %s11, %s432
      %p434 = scmp.lt.s32.totalorder %s24, 1
      %s435 = scalar_select %p434, %s24, 1
      %s436 = smul.addr %s435, 32
      %s437 = smul.addr %s436, 4
      %s438 = scalar_lea.vmem %s12, %s437
      %v440 = vld [vmem:[%s423] sm:$0xff]
      %v441 = vld [vmem:[%s423 + $0x8] sm:$0xff]
      %v442 = vld [vmem:[%s423 + $0x10] sm:$0xff]
      %v443 = vld [vmem:[%s423 + $0x18] sm:$0xff]
      %v444 = vld [vmem:[%s423 + $0x20] sm:$0xff]
      %v445 = vld [vmem:[%s423 + $0x28] sm:$0xff]
      %v446 = vld [vmem:[%s423 + $0x30] sm:$0xff]
      %v447 = vld [vmem:[%s423 + $0x38] sm:$0xff]
      %vm448 = vcmask 261120
      %v449 = vsel %vm448, %v440, 0.0
      %v450 = vsel %vm448, %v441, 0.0
      %v451 = vadd.f32 %v449, %v450
      %v452 = vsel %vm448, %v442, 0.0
      %v453 = vadd.f32 %v451, %v452
      %v454 = vsel %vm448, %v443, 0.0
      %v455 = vadd.f32 %v453, %v454
      %v456 = vsel %vm448, %v444, 0.0
      %v457 = vadd.f32 %v455, %v456
      %v458 = vsel %vm448, %v445, 0.0
      %v459 = vadd.f32 %v457, %v458
      %v460 = vsel %vm448, %v446, 0.0
      %v461 = vadd.f32 %v459, %v460
      %v462 = vsel %vm448, %v447, 0.0
      %v463 = vadd.f32 %v461, %v462
      %v464 = vrot.slane %v463, 4
      %v465 = vadd.f32 %v463, %v464
      %v466 = vrot.slane %v465, 2
      %v467 = vadd.f32 %v465, %v466
      %v468 = vrot.slane %v467, 1
      %v469 = vadd.f32 %v467, %v468
      %v470 = vmul.f32 %v440, %v440
      %v471 = vmul.f32 %v441, %v441
      %v472 = vmul.f32 %v442, %v442
      %v473 = vmul.f32 %v443, %v443
      %v474 = vmul.f32 %v444, %v444
      %v475 = vmul.f32 %v445, %v445
      %v476 = vmul.f32 %v446, %v446
      %v477 = vmul.f32 %v447, %v447
      %v478 = vsel %vm448, %v470, 0.0
      %v479 = vsel %vm448, %v471, 0.0
      %v480 = vadd.f32 %v478, %v479
      %v481 = vsel %vm448, %v472, 0.0
      %v482 = vadd.f32 %v480, %v481
      %v483 = vsel %vm448, %v473, 0.0
      %v484 = vadd.f32 %v482, %v483
      %v485 = vsel %vm448, %v474, 0.0
      %v486 = vadd.f32 %v484, %v485
      %v487 = vsel %vm448, %v475, 0.0
      %v488 = vadd.f32 %v486, %v487
      %v489 = vsel %vm448, %v476, 0.0
      %v490 = vadd.f32 %v488, %v489
      %v491 = vsel %vm448, %v477, 0.0
      %v492 = vadd.f32 %v490, %v491
      %v493 = vrot.slane %v492, 4
      %v494 = vadd.f32 %v492, %v493
      %v495 = vrot.slane %v494, 2
      %v496 = vadd.f32 %v494, %v495
      %v497 = vrot.slane %v496, 1
      %v498 = vadd.f32 %v496, %v497
      %v499 = vld [vmem:[%s3] sm:$0xff]
      %v500 = vld [vmem:[%s3 + $0x8] sm:$0xff]
      %v501 = vld [vmem:[%s3 + $0x10] sm:$0xff]
      %v502 = vld [vmem:[%s3 + $0x18] sm:$0xff]
      %v504 = vsel %vm448, %v469, 0
      %506 = vmatpush.msra.mxu0 0.0
      %507 = vmatpush.msra.mxu0 0.0
      %508 = vmatpush.msra.mxu0 0.0
      %509 = vmatpush.msra.mxu0 0.0
      %510 = vmatpush.msra.mxu0 0.0
      %511 = vmatpush.msra.mxu0 0.0
      %512 = vmatpush.msra.mxu0 0.0
      %513 = vmatpush.msra.mxu0 0.0
      %514 = vmatpush.msra.mxu0 0.0
      %515 = vmatpush.msra.mxu0 0.0
      %516 = vmatpush.msra.mxu0 0.0
      %517 = vmatpush.msra.mxu0 0.0
      %518 = vmatpush.msra.mxu0 %v502
      %519 = vmatpush.msra.mxu0 %v501
      %520 = vmatpush.msra.mxu0 %v500
      %521 = vmatpush.msra.mxu0 %v499
      %522 = vmatmul.f32.gmra.mxu0 %v504
      %v523 = vpop.f32.mrf.mxu0
      %v524 = vadd.f32 0.0, %v523
      %525 = vdwg.mxu0
      %v527 = vsel %vm448, %v498, 0
      %529 = vmatpush.msra.mxu0 0.0
      %530 = vmatpush.msra.mxu0 0.0
      %531 = vmatpush.msra.mxu0 0.0
      %532 = vmatpush.msra.mxu0 0.0
      %533 = vmatpush.msra.mxu0 0.0
      %534 = vmatpush.msra.mxu0 0.0
      %535 = vmatpush.msra.mxu0 0.0
      %536 = vmatpush.msra.mxu0 0.0
      %537 = vmatpush.msra.mxu0 0.0
      %538 = vmatpush.msra.mxu0 0.0
      %539 = vmatpush.msra.mxu0 0.0
      %540 = vmatpush.msra.mxu0 0.0
      %541 = vmatpush.msra.mxu0 %v502
      %542 = vmatpush.msra.mxu0 %v501
      %543 = vmatpush.msra.mxu0 %v500
      %544 = vmatpush.msra.mxu0 %v499
      %545 = vmatmul.f32.gmra.mxu0 %v527
      %v546 = vpop.f32.mrf.mxu0
      %v547 = vadd.f32 0.0, %v546
      %548 = vdwg.mxu0
      %v549 = vmul.f32 %v524, %v524
      %v550 = vsub.f32 %v547, %v549
      %v551 = vmax.f32 %v550, 0.0
      %v552 = vadd.f32 %v551, 1e-06
      %v553 = vrsqrt.pop %v552
      %v554 = vmul.f32 %v553, %v552
      %v555 = vmul.f32 %v554, %v553
      %v556 = vmul.f32 0.5, %v555
      %v557 = vsub.f32 1.5, %v556
      %v558 = vmul.f32 %v553, %v557
      %vm559 = vweird.f32 %v552
      %vm560 = vweird.f32 %v553
      %vm561 = vmor %vm559, %vm560
      %v562 = vsel %vm561, %v553, %v558
      %v563 = vperm.slane %v524, 0
      %v564 = vsub.f32 %v440, %v563
      %v565 = vsub.f32 %v441, %v563
      %v566 = vsub.f32 %v442, %v563
      %v567 = vsub.f32 %v443, %v563
      %v568 = vsub.f32 %v444, %v563
      %v569 = vsub.f32 %v445, %v563
      %v570 = vsub.f32 %v446, %v563
      %v571 = vsub.f32 %v447, %v563
      %v572 = vld [vmem:[%s1] sm:$0x1]
      %v573 = vmul.f32 %v562, %v572
      %v574 = vperm.slane %v573, 0
      %v575 = vmul.f32 %v564, %v574
      %v576 = vmul.f32 %v565, %v574
      %v577 = vmul.f32 %v566, %v574
      %v578 = vmul.f32 %v567, %v574
      %v579 = vmul.f32 %v568, %v574
      %v580 = vmul.f32 %v569, %v574
      %v581 = vmul.f32 %v570, %v574
      %v582 = vmul.f32 %v571, %v574
      %v583 = vld [vmem:[%s2] sm:$0x1]
      %v585 = vperm.slane %v583, 0
      %v587 = vadd.f32 %v575, %v585
      %v588 = vadd.f32 %v576, %v585
      %v589 = vadd.f32 %v577, %v585
      %v590 = vadd.f32 %v578, %v585
      %v591 = vadd.f32 %v579, %v585
      %v592 = vadd.f32 %v580, %v585
      %v593 = vadd.f32 %v581, %v585
      %v594 = vadd.f32 %v582, %v585
      %v595 = vpack.c.bf16 %v588, %v587
      %v596 = vpack.c.bf16 %v590, %v589
      %v597 = vpack.c.bf16 %v592, %v591
      %v598 = vpack.c.bf16 %v594, %v593
      %v599 = vld [vmem:[%s4] sm:$0xf]
      %v600 = vld [vmem:[%s4 + $0x4] sm:$0xf]
      %v601 = vld [vmem:[%s4 + $0x8] sm:$0xf]
      %v602 = vld [vmem:[%s4 + $0xc] sm:$0xf]
      %v603 = vld [vmem:[%s5] sm:$0x1]
      %v605 = vperm.slane %v603, 0
      %v611 = vunpack.c.l.b16 %v599
      %v612 = vunpack.c.l.b16 %v600
      %v613 = vunpack.c.l.b16 %v601
      %v614 = vunpack.c.l.b16 %v602
      %v615 = vpack.c.b16 %v612, %v611
      %v616 = vpack.c.b16 %v614, %v613
      %v620 = vsel %vm448, %v595, 0
      %v623 = vsel %vm448, %v596, 0
      %v626 = vsel %vm448, %v597, 0
      %v629 = vsel %vm448, %v598, 0
      %631 = vmatpush.bf16.msra.mxu0 0
      %632 = vmatpush.bf16.msra.mxu0 0
      %633 = vmatpush.bf16.msra.mxu0 0
      %634 = vmatpush.bf16.msra.mxu0 0
      %635 = vmatpush.bf16.msra.mxu0 0
      %636 = vmatpush.bf16.msra.mxu0 0
      %637 = vmatpush.bf16.msra.mxu0 %v616
      %638 = vmatpush.bf16.msra.mxu0 %v615
      %639 = vmatmul.bf16.gmra.mxu0 %v620
      %v640 = vpop.f32.mrf.mxu0
      %v641 = vadd.f32 %v605, %v640
      %v642 = vpop.f32.mrf.mxu0
      %v643 = vadd.f32 %v605, %v642
      %644 = vmatmul.bf16.gmra.mxu0 %v623
      %v645 = vpop.f32.mrf.mxu0
      %v646 = vadd.f32 %v605, %v645
      %v647 = vpop.f32.mrf.mxu0
      %v648 = vadd.f32 %v605, %v647
      %649 = vmatmul.bf16.gmra.mxu0 %v626
      %v650 = vpop.f32.mrf.mxu0
      %v651 = vadd.f32 %v605, %v650
      %v652 = vpop.f32.mrf.mxu0
      %v653 = vadd.f32 %v605, %v652
      %654 = vmatmul.bf16.gmra.mxu0 %v629
      %v655 = vpop.f32.mrf.mxu0
      %v656 = vadd.f32 %v605, %v655
      %v657 = vpop.f32.mrf.mxu0
      %v658 = vadd.f32 %v605, %v657
      %659 = vdwg.mxu0
      %v660 = vpack.c.bf16 %v641, %v641
      %v661 = vpack.c.bf16 %v643, %v643
      %v662 = vpack.c.bf16 %v646, %v646
      %v663 = vpack.c.bf16 %v648, %v648
      %v664 = vpack.c.bf16 %v651, %v651
      %v665 = vpack.c.bf16 %v653, %v653
      %v666 = vpack.c.bf16 %v656, %v656
      %v667 = vpack.c.bf16 %v658, %v658
      %vm668 = vcmask 60416
      %669 = vst.msk [vmem:[%s428] sm:$0xf] %vm668, %v660
      %670 = vst.msk [vmem:[%s428 + $0x4] sm:$0xf] %vm668, %v661
      %671 = vst.msk [vmem:[%s428 + $0x8] sm:$0xf] %vm668, %v662
      %672 = vst.msk [vmem:[%s428 + $0xc] sm:$0xf] %vm668, %v663
      %673 = vst.msk [vmem:[%s428 + $0x10] sm:$0xf] %vm668, %v664
      %674 = vst.msk [vmem:[%s428 + $0x14] sm:$0xf] %vm668, %v665
      %675 = vst.msk [vmem:[%s428 + $0x18] sm:$0xf] %vm668, %v666
      %676 = vst.msk [vmem:[%s428 + $0x1c] sm:$0xf] %vm668, %v667
      %v677 = vld [vmem:[%s6] sm:$0xf]
      %v678 = vld [vmem:[%s6 + $0x4] sm:$0xf]
      %v679 = vld [vmem:[%s6 + $0x8] sm:$0xf]
      %v680 = vld [vmem:[%s6 + $0xc] sm:$0xf]
      %v681 = vld [vmem:[%s7] sm:$0x1]
      %v683 = vperm.slane %v681, 0
      %v689 = vunpack.c.l.b16 %v677
      %v690 = vunpack.c.l.b16 %v678
      %v691 = vunpack.c.l.b16 %v679
      %v692 = vunpack.c.l.b16 %v680
      %v693 = vpack.c.b16 %v690, %v689
      %v694 = vpack.c.b16 %v692, %v691
      %697 = vmatpush.bf16.msra.mxu0 0
      %698 = vmatpush.bf16.msra.mxu0 0
      %699 = vmatpush.bf16.msra.mxu0 0
      %700 = vmatpush.bf16.msra.mxu0 0
      %701 = vmatpush.bf16.msra.mxu0 0
      %702 = vmatpush.bf16.msra.mxu0 0
      %703 = vmatpush.bf16.msra.mxu0 %v694
      %704 = vmatpush.bf16.msra.mxu0 %v693
      %705 = vmatmul.bf16.gmra.mxu0 %v620
      %v706 = vpop.f32.mrf.mxu0
      %v707 = vadd.f32 %v683, %v706
      %v708 = vpop.f32.mrf.mxu0
      %v709 = vadd.f32 %v683, %v708
      %710 = vmatmul.bf16.gmra.mxu0 %v623
      %v711 = vpop.f32.mrf.mxu0
      %v712 = vadd.f32 %v683, %v711
      %v713 = vpop.f32.mrf.mxu0
      %v714 = vadd.f32 %v683, %v713
      %715 = vmatmul.bf16.gmra.mxu0 %v626
      %v716 = vpop.f32.mrf.mxu0
      %v717 = vadd.f32 %v683, %v716
      %v718 = vpop.f32.mrf.mxu0
      %v719 = vadd.f32 %v683, %v718
      %720 = vmatmul.bf16.gmra.mxu0 %v629
      %v721 = vpop.f32.mrf.mxu0
      %v722 = vadd.f32 %v683, %v721
      %v723 = vpop.f32.mrf.mxu0
      %v724 = vadd.f32 %v683, %v723
      %725 = vdwg.mxu0
      %v726 = vpack.c.bf16 %v707, %v707
      %v727 = vpack.c.bf16 %v709, %v709
      %v728 = vpack.c.bf16 %v712, %v712
      %v729 = vpack.c.bf16 %v714, %v714
      %v730 = vpack.c.bf16 %v717, %v717
      %v731 = vpack.c.bf16 %v719, %v719
      %v732 = vpack.c.bf16 %v722, %v722
      %v733 = vpack.c.bf16 %v724, %v724
      %734 = vst.msk [vmem:[%s433] sm:$0xf] %vm668, %v726
      %735 = vst.msk [vmem:[%s433 + $0x4] sm:$0xf] %vm668, %v727
      %736 = vst.msk [vmem:[%s433 + $0x8] sm:$0xf] %vm668, %v728
      %737 = vst.msk [vmem:[%s433 + $0xc] sm:$0xf] %vm668, %v729
      %738 = vst.msk [vmem:[%s433 + $0x10] sm:$0xf] %vm668, %v730
      %739 = vst.msk [vmem:[%s433 + $0x14] sm:$0xf] %vm668, %v731
      %740 = vst.msk [vmem:[%s433 + $0x18] sm:$0xf] %vm668, %v732
      %741 = vst.msk [vmem:[%s433 + $0x1c] sm:$0xf] %vm668, %v733
      %v742 = vld [vmem:[%s8] sm:$0xf]
      %v743 = vld [vmem:[%s8 + $0x4] sm:$0xf]
      %v744 = vld [vmem:[%s8 + $0x8] sm:$0xf]
      %v745 = vld [vmem:[%s8 + $0xc] sm:$0xf]
      %v746 = vld [vmem:[%s9] sm:$0x1]
      %v748 = vperm.slane %v746, 0
      %v754 = vunpack.c.l.b16 %v742
      %v755 = vunpack.c.l.b16 %v743
      %v756 = vunpack.c.l.b16 %v744
      %v757 = vunpack.c.l.b16 %v745
      %v758 = vpack.c.b16 %v755, %v754
      %v759 = vpack.c.b16 %v757, %v756
      %762 = vmatpush.bf16.msra.mxu0 0
      %763 = vmatpush.bf16.msra.mxu0 0
      %764 = vmatpush.bf16.msra.mxu0 0
      %765 = vmatpush.bf16.msra.mxu0 0
      %766 = vmatpush.bf16.msra.mxu0 0
      %767 = vmatpush.bf16.msra.mxu0 0
      %768 = vmatpush.bf16.msra.mxu0 %v759
      %769 = vmatpush.bf16.msra.mxu0 %v758
      %770 = vmatmul.bf16.gmra.mxu0 %v620
      %v771 = vpop.f32.mrf.mxu0
      %v772 = vadd.f32 %v748, %v771
      %v773 = vpop.f32.mrf.mxu0
      %v774 = vadd.f32 %v748, %v773
      %775 = vmatmul.bf16.gmra.mxu0 %v623
      %v776 = vpop.f32.mrf.mxu0
      %v777 = vadd.f32 %v748, %v776
      %v778 = vpop.f32.mrf.mxu0
      %v779 = vadd.f32 %v748, %v778
      %780 = vmatmul.bf16.gmra.mxu0 %v626
      %v781 = vpop.f32.mrf.mxu0
      %v782 = vadd.f32 %v748, %v781
      %v783 = vpop.f32.mrf.mxu0
      %v784 = vadd.f32 %v748, %v783
      %785 = vmatmul.bf16.gmra.mxu0 %v629
      %v786 = vpop.f32.mrf.mxu0
      %v787 = vadd.f32 %v748, %v786
      %v788 = vpop.f32.mrf.mxu0
      %v789 = vadd.f32 %v748, %v788
      %790 = vdwg.mxu0
      %v791 = vpack.c.bf16 %v772, %v772
      %v792 = vpack.c.bf16 %v774, %v774
      %v793 = vpack.c.bf16 %v777, %v777
      %v794 = vpack.c.bf16 %v779, %v779
      %v795 = vpack.c.bf16 %v782, %v782
      %v796 = vpack.c.bf16 %v784, %v784
      %v797 = vpack.c.bf16 %v787, %v787
      %v798 = vpack.c.bf16 %v789, %v789
      %799 = vst.msk [vmem:[%s438] sm:$0xf] %vm668, %v791
      %800 = vst.msk [vmem:[%s438 + $0x4] sm:$0xf] %vm668, %v792
      %801 = vst.msk [vmem:[%s438 + $0x8] sm:$0xf] %vm668, %v793
      %802 = vst.msk [vmem:[%s438 + $0xc] sm:$0xf] %vm668, %v794
      %803 = vst.msk [vmem:[%s438 + $0x10] sm:$0xf] %vm668, %v795
      %804 = vst.msk [vmem:[%s438 + $0x14] sm:$0xf] %vm668, %v796
      %805 = vst.msk [vmem:[%s438 + $0x18] sm:$0xf] %vm668, %v797
      %806 = vst.msk [vmem:[%s438 + $0x1c] sm:$0xf] %vm668, %v798
      %s807 = scalar_lea.vmem %s4, 16
      %v808 = vld [vmem:[%s807] sm:$0xf]
      %v809 = vld [vmem:[%s807 + $0x4] sm:$0xf]
      %v810 = vld [vmem:[%s807 + $0x8] sm:$0xf]
      %v811 = vld [vmem:[%s807 + $0xc] sm:$0xf]
      %s812 = scalar_lea.vmem %s5, 1
      %v813 = vld [vmem:[%s812] sm:$0x1]
      %v815 = vperm.slane %v813, 0
      %v821 = vunpack.c.l.b16 %v808
      %v822 = vunpack.c.l.b16 %v809
      %v823 = vunpack.c.l.b16 %v810
      %v824 = vunpack.c.l.b16 %v811
      %v825 = vpack.c.b16 %v822, %v821
      %v826 = vpack.c.b16 %v824, %v823
      %829 = vmatpush.bf16.msra.mxu0 0
      %830 = vmatpush.bf16.msra.mxu0 0
      %831 = vmatpush.bf16.msra.mxu0 0
      %832 = vmatpush.bf16.msra.mxu0 0
      %833 = vmatpush.bf16.msra.mxu0 0
      %834 = vmatpush.bf16.msra.mxu0 0
      %835 = vmatpush.bf16.msra.mxu0 %v826
      %836 = vmatpush.bf16.msra.mxu0 %v825
      %837 = vmatmul.bf16.gmra.mxu0 %v620
      %v838 = vpop.f32.mrf.mxu0
      %v839 = vadd.f32 %v815, %v838
      %v840 = vpop.f32.mrf.mxu0
      %v841 = vadd.f32 %v815, %v840
      %842 = vmatmul.bf16.gmra.mxu0 %v623
      %v843 = vpop.f32.mrf.mxu0
      %v844 = vadd.f32 %v815, %v843
      %v845 = vpop.f32.mrf.mxu0
      %v846 = vadd.f32 %v815, %v845
      %847 = vmatmul.bf16.gmra.mxu0 %v626
      %v848 = vpop.f32.mrf.mxu0
      %v849 = vadd.f32 %v815, %v848
      %v850 = vpop.f32.mrf.mxu0
      %v851 = vadd.f32 %v815, %v850
      %852 = vmatmul.bf16.gmra.mxu0 %v629
      %v853 = vpop.f32.mrf.mxu0
      %v854 = vadd.f32 %v815, %v853
      %v855 = vpop.f32.mrf.mxu0
      %v856 = vadd.f32 %v815, %v855
      %857 = vdwg.mxu0
      %v858 = vpack.c.bf16 %v839, %v839
      %v859 = vpack.c.bf16 %v841, %v841
      %v860 = vpack.c.bf16 %v844, %v844
      %v861 = vpack.c.bf16 %v846, %v846
      %v862 = vpack.c.bf16 %v849, %v849
      %v863 = vpack.c.bf16 %v851, %v851
      %v864 = vpack.c.bf16 %v854, %v854
      %v865 = vpack.c.bf16 %v856, %v856
      %s866 = scalar_lea.vmem %s428, 32
      %867 = vst.msk [vmem:[%s866] sm:$0xf] %vm668, %v858
      %868 = vst.msk [vmem:[%s866 + $0x4] sm:$0xf] %vm668, %v859
      %869 = vst.msk [vmem:[%s866 + $0x8] sm:$0xf] %vm668, %v860
      %870 = vst.msk [vmem:[%s866 + $0xc] sm:$0xf] %vm668, %v861
      %871 = vst.msk [vmem:[%s866 + $0x10] sm:$0xf] %vm668, %v862
      %872 = vst.msk [vmem:[%s866 + $0x14] sm:$0xf] %vm668, %v863
      %873 = vst.msk [vmem:[%s866 + $0x18] sm:$0xf] %vm668, %v864
      %874 = vst.msk [vmem:[%s866 + $0x1c] sm:$0xf] %vm668, %v865
      %s875 = scalar_lea.vmem %s6, 16
      %v876 = vld [vmem:[%s875] sm:$0xf]
      %v877 = vld [vmem:[%s875 + $0x4] sm:$0xf]
      %v878 = vld [vmem:[%s875 + $0x8] sm:$0xf]
      %v879 = vld [vmem:[%s875 + $0xc] sm:$0xf]
      %s880 = scalar_lea.vmem %s7, 1
      %v881 = vld [vmem:[%s880] sm:$0x1]
      %v883 = vperm.slane %v881, 0
      %v889 = vunpack.c.l.b16 %v876
      %v890 = vunpack.c.l.b16 %v877
      %v891 = vunpack.c.l.b16 %v878
      %v892 = vunpack.c.l.b16 %v879
      %v893 = vpack.c.b16 %v890, %v889
      %v894 = vpack.c.b16 %v892, %v891
      %897 = vmatpush.bf16.msra.mxu0 0
      %898 = vmatpush.bf16.msra.mxu0 0
      %899 = vmatpush.bf16.msra.mxu0 0
      %900 = vmatpush.bf16.msra.mxu0 0
      %901 = vmatpush.bf16.msra.mxu0 0
      %902 = vmatpush.bf16.msra.mxu0 0
      %903 = vmatpush.bf16.msra.mxu0 %v894
      %904 = vmatpush.bf16.msra.mxu0 %v893
      %905 = vmatmul.bf16.gmra.mxu0 %v620
      %v906 = vpop.f32.mrf.mxu0
      %v907 = vadd.f32 %v883, %v906
      %v908 = vpop.f32.mrf.mxu0
      %v909 = vadd.f32 %v883, %v908
      %910 = vmatmul.bf16.gmra.mxu0 %v623
      %v911 = vpop.f32.mrf.mxu0
      %v912 = vadd.f32 %v883, %v911
      %v913 = vpop.f32.mrf.mxu0
      %v914 = vadd.f32 %v883, %v913
      %915 = vmatmul.bf16.gmra.mxu0 %v626
      %v916 = vpop.f32.mrf.mxu0
      %v917 = vadd.f32 %v883, %v916
      %v918 = vpop.f32.mrf.mxu0
      %v919 = vadd.f32 %v883, %v918
      %920 = vmatmul.bf16.gmra.mxu0 %v629
      %v921 = vpop.f32.mrf.mxu0
      %v922 = vadd.f32 %v883, %v921
      %v923 = vpop.f32.mrf.mxu0
      %v924 = vadd.f32 %v883, %v923
      %925 = vdwg.mxu0
      %v926 = vpack.c.bf16 %v907, %v907
      %v927 = vpack.c.bf16 %v909, %v909
      %v928 = vpack.c.bf16 %v912, %v912
      %v929 = vpack.c.bf16 %v914, %v914
      %v930 = vpack.c.bf16 %v917, %v917
      %v931 = vpack.c.bf16 %v919, %v919
      %v932 = vpack.c.bf16 %v922, %v922
      %v933 = vpack.c.bf16 %v924, %v924
      %s934 = scalar_lea.vmem %s433, 32
      %935 = vst.msk [vmem:[%s934] sm:$0xf] %vm668, %v926
      %936 = vst.msk [vmem:[%s934 + $0x4] sm:$0xf] %vm668, %v927
      %937 = vst.msk [vmem:[%s934 + $0x8] sm:$0xf] %vm668, %v928
      %938 = vst.msk [vmem:[%s934 + $0xc] sm:$0xf] %vm668, %v929
      %939 = vst.msk [vmem:[%s934 + $0x10] sm:$0xf] %vm668, %v930
      %940 = vst.msk [vmem:[%s934 + $0x14] sm:$0xf] %vm668, %v931
      %941 = vst.msk [vmem:[%s934 + $0x18] sm:$0xf] %vm668, %v932
      %942 = vst.msk [vmem:[%s934 + $0x1c] sm:$0xf] %vm668, %v933
      %s943 = scalar_lea.vmem %s8, 16
      %v944 = vld [vmem:[%s943] sm:$0xf]
      %v945 = vld [vmem:[%s943 + $0x4] sm:$0xf]
      %v946 = vld [vmem:[%s943 + $0x8] sm:$0xf]
      %v947 = vld [vmem:[%s943 + $0xc] sm:$0xf]
      %s948 = scalar_lea.vmem %s9, 1
      %v949 = vld [vmem:[%s948] sm:$0x1]
      %v951 = vperm.slane %v949, 0
      %v957 = vunpack.c.l.b16 %v944
      %v958 = vunpack.c.l.b16 %v945
      %v959 = vunpack.c.l.b16 %v946
      %v960 = vunpack.c.l.b16 %v947
      %v961 = vpack.c.b16 %v958, %v957
      %v962 = vpack.c.b16 %v960, %v959
      %965 = vmatpush.bf16.msra.mxu0 0
      %966 = vmatpush.bf16.msra.mxu0 0
      %967 = vmatpush.bf16.msra.mxu0 0
      %968 = vmatpush.bf16.msra.mxu0 0
      %969 = vmatpush.bf16.msra.mxu0 0
      %970 = vmatpush.bf16.msra.mxu0 0
      %971 = vmatpush.bf16.msra.mxu0 %v962
      %972 = vmatpush.bf16.msra.mxu0 %v961
      %973 = vmatmul.bf16.gmra.mxu0 %v620
      %v974 = vpop.f32.mrf.mxu0
      %v975 = vadd.f32 %v951, %v974
      %v976 = vpop.f32.mrf.mxu0
      %v977 = vadd.f32 %v951, %v976
      %978 = vmatmul.bf16.gmra.mxu0 %v623
      %v979 = vpop.f32.mrf.mxu0
      %v980 = vadd.f32 %v951, %v979
      %v981 = vpop.f32.mrf.mxu0
      %v982 = vadd.f32 %v951, %v981
      %983 = vmatmul.bf16.gmra.mxu0 %v626
      %v984 = vpop.f32.mrf.mxu0
      %v985 = vadd.f32 %v951, %v984
      %v986 = vpop.f32.mrf.mxu0
      %v987 = vadd.f32 %v951, %v986
      %988 = vmatmul.bf16.gmra.mxu0 %v629
      %v989 = vpop.f32.mrf.mxu0
      %v990 = vadd.f32 %v951, %v989
      %v991 = vpop.f32.mrf.mxu0
      %v992 = vadd.f32 %v951, %v991
      %993 = vdwg.mxu0
      %v994 = vpack.c.bf16 %v975, %v975
      %v995 = vpack.c.bf16 %v977, %v977
      %v996 = vpack.c.bf16 %v980, %v980
      %v997 = vpack.c.bf16 %v982, %v982
      %v998 = vpack.c.bf16 %v985, %v985
      %v999 = vpack.c.bf16 %v987, %v987
      %v1000 = vpack.c.bf16 %v990, %v990
      %v1001 = vpack.c.bf16 %v992, %v992
      %s1002 = scalar_lea.vmem %s438, 32
      %1003 = vst.msk [vmem:[%s1002] sm:$0xf] %vm668, %v994
      %1004 = vst.msk [vmem:[%s1002 + $0x4] sm:$0xf] %vm668, %v995
      %1005 = vst.msk [vmem:[%s1002 + $0x8] sm:$0xf] %vm668, %v996
      %1006 = vst.msk [vmem:[%s1002 + $0xc] sm:$0xf] %vm668, %v997
      %1007 = vst.msk [vmem:[%s1002 + $0x10] sm:$0xf] %vm668, %v998
      %1008 = vst.msk [vmem:[%s1002 + $0x14] sm:$0xf] %vm668, %v999
      %1009 = vst.msk [vmem:[%s1002 + $0x18] sm:$0xf] %vm668, %v1000
      %1010 = vst.msk [vmem:[%s1002 + $0x1c] sm:$0xf] %vm668, %v1001
      %s1011 = scalar_lea.vmem %s4, 32
      %v1012 = vld [vmem:[%s1011] sm:$0xf]
      %v1013 = vld [vmem:[%s1011 + $0x4] sm:$0xf]
      %v1014 = vld [vmem:[%s1011 + $0x8] sm:$0xf]
      %v1015 = vld [vmem:[%s1011 + $0xc] sm:$0xf]
      %s1016 = scalar_lea.vmem %s5, 2
      %v1017 = vld [vmem:[%s1016] sm:$0x1]
      %v1019 = vperm.slane %v1017, 0
      %v1025 = vunpack.c.l.b16 %v1012
      %v1026 = vunpack.c.l.b16 %v1013
      %v1027 = vunpack.c.l.b16 %v1014
      %v1028 = vunpack.c.l.b16 %v1015
      %v1029 = vpack.c.b16 %v1026, %v1025
      %v1030 = vpack.c.b16 %v1028, %v1027
      %1033 = vmatpush.bf16.msra.mxu0 0
      %1034 = vmatpush.bf16.msra.mxu0 0
      %1035 = vmatpush.bf16.msra.mxu0 0
      %1036 = vmatpush.bf16.msra.mxu0 0
      %1037 = vmatpush.bf16.msra.mxu0 0
      %1038 = vmatpush.bf16.msra.mxu0 0
      %1039 = vmatpush.bf16.msra.mxu0 %v1030
      %1040 = vmatpush.bf16.msra.mxu0 %v1029
      %1041 = vmatmul.bf16.gmra.mxu0 %v620
      %v1042 = vpop.f32.mrf.mxu0
      %v1043 = vadd.f32 %v1019, %v1042
      %v1044 = vpop.f32.mrf.mxu0
      %v1045 = vadd.f32 %v1019, %v1044
      %1046 = vmatmul.bf16.gmra.mxu0 %v623
      %v1047 = vpop.f32.mrf.mxu0
      %v1048 = vadd.f32 %v1019, %v1047
      %v1049 = vpop.f32.mrf.mxu0
      %v1050 = vadd.f32 %v1019, %v1049
      %1051 = vmatmul.bf16.gmra.mxu0 %v626
      %v1052 = vpop.f32.mrf.mxu0
      %v1053 = vadd.f32 %v1019, %v1052
      %v1054 = vpop.f32.mrf.mxu0
      %v1055 = vadd.f32 %v1019, %v1054
      %1056 = vmatmul.bf16.gmra.mxu0 %v629
      %v1057 = vpop.f32.mrf.mxu0
      %v1058 = vadd.f32 %v1019, %v1057
      %v1059 = vpop.f32.mrf.mxu0
      %v1060 = vadd.f32 %v1019, %v1059
      %1061 = vdwg.mxu0
      %v1062 = vpack.c.bf16 %v1043, %v1043
      %v1063 = vpack.c.bf16 %v1045, %v1045
      %v1064 = vpack.c.bf16 %v1048, %v1048
      %v1065 = vpack.c.bf16 %v1050, %v1050
      %v1066 = vpack.c.bf16 %v1053, %v1053
      %v1067 = vpack.c.bf16 %v1055, %v1055
      %v1068 = vpack.c.bf16 %v1058, %v1058
      %v1069 = vpack.c.bf16 %v1060, %v1060
      %s1070 = scalar_lea.vmem %s428, 64
      %1071 = vst.msk [vmem:[%s1070] sm:$0xf] %vm668, %v1062
      %1072 = vst.msk [vmem:[%s1070 + $0x4] sm:$0xf] %vm668, %v1063
      %1073 = vst.msk [vmem:[%s1070 + $0x8] sm:$0xf] %vm668, %v1064
      %1074 = vst.msk [vmem:[%s1070 + $0xc] sm:$0xf] %vm668, %v1065
      %1075 = vst.msk [vmem:[%s1070 + $0x10] sm:$0xf] %vm668, %v1066
      %1076 = vst.msk [vmem:[%s1070 + $0x14] sm:$0xf] %vm668, %v1067
      %1077 = vst.msk [vmem:[%s1070 + $0x18] sm:$0xf] %vm668, %v1068
      %1078 = vst.msk [vmem:[%s1070 + $0x1c] sm:$0xf] %vm668, %v1069
      %s1079 = scalar_lea.vmem %s6, 32
      %v1080 = vld [vmem:[%s1079] sm:$0xf]
      %v1081 = vld [vmem:[%s1079 + $0x4] sm:$0xf]
      %v1082 = vld [vmem:[%s1079 + $0x8] sm:$0xf]
      %v1083 = vld [vmem:[%s1079 + $0xc] sm:$0xf]
      %s1084 = scalar_lea.vmem %s7, 2
      %v1085 = vld [vmem:[%s1084] sm:$0x1]
      %v1087 = vperm.slane %v1085, 0
      %v1093 = vunpack.c.l.b16 %v1080
      %v1094 = vunpack.c.l.b16 %v1081
      %v1095 = vunpack.c.l.b16 %v1082
      %v1096 = vunpack.c.l.b16 %v1083
      %v1097 = vpack.c.b16 %v1094, %v1093
      %v1098 = vpack.c.b16 %v1096, %v1095
      %1101 = vmatpush.bf16.msra.mxu0 0
      %1102 = vmatpush.bf16.msra.mxu0 0
      %1103 = vmatpush.bf16.msra.mxu0 0
      %1104 = vmatpush.bf16.msra.mxu0 0
      %1105 = vmatpush.bf16.msra.mxu0 0
      %1106 = vmatpush.bf16.msra.mxu0 0
      %1107 = vmatpush.bf16.msra.mxu0 %v1098
      %1108 = vmatpush.bf16.msra.mxu0 %v1097
      %1109 = vmatmul.bf16.gmra.mxu0 %v620
      %v1110 = vpop.f32.mrf.mxu0
      %v1111 = vadd.f32 %v1087, %v1110
      %v1112 = vpop.f32.mrf.mxu0
      %v1113 = vadd.f32 %v1087, %v1112
      %1114 = vmatmul.bf16.gmra.mxu0 %v623
      %v1115 = vpop.f32.mrf.mxu0
      %v1116 = vadd.f32 %v1087, %v1115
      %v1117 = vpop.f32.mrf.mxu0
      %v1118 = vadd.f32 %v1087, %v1117
      %1119 = vmatmul.bf16.gmra.mxu0 %v626
      %v1120 = vpop.f32.mrf.mxu0
      %v1121 = vadd.f32 %v1087, %v1120
      %v1122 = vpop.f32.mrf.mxu0
      %v1123 = vadd.f32 %v1087, %v1122
      %1124 = vmatmul.bf16.gmra.mxu0 %v629
      %v1125 = vpop.f32.mrf.mxu0
      %v1126 = vadd.f32 %v1087, %v1125
      %v1127 = vpop.f32.mrf.mxu0
      %v1128 = vadd.f32 %v1087, %v1127
      %1129 = vdwg.mxu0
      %v1130 = vpack.c.bf16 %v1111, %v1111
      %v1131 = vpack.c.bf16 %v1113, %v1113
      %v1132 = vpack.c.bf16 %v1116, %v1116
      %v1133 = vpack.c.bf16 %v1118, %v1118
      %v1134 = vpack.c.bf16 %v1121, %v1121
      %v1135 = vpack.c.bf16 %v1123, %v1123
      %v1136 = vpack.c.bf16 %v1126, %v1126
      %v1137 = vpack.c.bf16 %v1128, %v1128
      %s1138 = scalar_lea.vmem %s433, 64
      %1139 = vst.msk [vmem:[%s1138] sm:$0xf] %vm668, %v1130
      %1140 = vst.msk [vmem:[%s1138 + $0x4] sm:$0xf] %vm668, %v1131
      %1141 = vst.msk [vmem:[%s1138 + $0x8] sm:$0xf] %vm668, %v1132
      %1142 = vst.msk [vmem:[%s1138 + $0xc] sm:$0xf] %vm668, %v1133
      %1143 = vst.msk [vmem:[%s1138 + $0x10] sm:$0xf] %vm668, %v1134
      %1144 = vst.msk [vmem:[%s1138 + $0x14] sm:$0xf] %vm668, %v1135
      %1145 = vst.msk [vmem:[%s1138 + $0x18] sm:$0xf] %vm668, %v1136
      %1146 = vst.msk [vmem:[%s1138 + $0x1c] sm:$0xf] %vm668, %v1137
      %s1147 = scalar_lea.vmem %s8, 32
      %v1148 = vld [vmem:[%s1147] sm:$0xf]
      %v1149 = vld [vmem:[%s1147 + $0x4] sm:$0xf]
      %v1150 = vld [vmem:[%s1147 + $0x8] sm:$0xf]
      %v1151 = vld [vmem:[%s1147 + $0xc] sm:$0xf]
      %s1152 = scalar_lea.vmem %s9, 2
      %v1153 = vld [vmem:[%s1152] sm:$0x1]
      %v1155 = vperm.slane %v1153, 0
      %v1161 = vunpack.c.l.b16 %v1148
      %v1162 = vunpack.c.l.b16 %v1149
      %v1163 = vunpack.c.l.b16 %v1150
      %v1164 = vunpack.c.l.b16 %v1151
      %v1165 = vpack.c.b16 %v1162, %v1161
      %v1166 = vpack.c.b16 %v1164, %v1163
      %1169 = vmatpush.bf16.msra.mxu0 0
      %1170 = vmatpush.bf16.msra.mxu0 0
      %1171 = vmatpush.bf16.msra.mxu0 0
      %1172 = vmatpush.bf16.msra.mxu0 0
      %1173 = vmatpush.bf16.msra.mxu0 0
      %1174 = vmatpush.bf16.msra.mxu0 0
      %1175 = vmatpush.bf16.msra.mxu0 %v1166
      %1176 = vmatpush.bf16.msra.mxu0 %v1165
      %1177 = vmatmul.bf16.gmra.mxu0 %v620
      %v1178 = vpop.f32.mrf.mxu0
      %v1179 = vadd.f32 %v1155, %v1178
      %v1180 = vpop.f32.mrf.mxu0
      %v1181 = vadd.f32 %v1155, %v1180
      %1182 = vmatmul.bf16.gmra.mxu0 %v623
      %v1183 = vpop.f32.mrf.mxu0
      %v1184 = vadd.f32 %v1155, %v1183
      %v1185 = vpop.f32.mrf.mxu0
      %v1186 = vadd.f32 %v1155, %v1185
      %1187 = vmatmul.bf16.gmra.mxu0 %v626
      %v1188 = vpop.f32.mrf.mxu0
      %v1189 = vadd.f32 %v1155, %v1188
      %v1190 = vpop.f32.mrf.mxu0
      %v1191 = vadd.f32 %v1155, %v1190
      %1192 = vmatmul.bf16.gmra.mxu0 %v629
      %v1193 = vpop.f32.mrf.mxu0
      %v1194 = vadd.f32 %v1155, %v1193
      %v1195 = vpop.f32.mrf.mxu0
      %v1196 = vadd.f32 %v1155, %v1195
      %1197 = vdwg.mxu0
      %v1198 = vpack.c.bf16 %v1179, %v1179
      %v1199 = vpack.c.bf16 %v1181, %v1181
      %v1200 = vpack.c.bf16 %v1184, %v1184
      %v1201 = vpack.c.bf16 %v1186, %v1186
      %v1202 = vpack.c.bf16 %v1189, %v1189
      %v1203 = vpack.c.bf16 %v1191, %v1191
      %v1204 = vpack.c.bf16 %v1194, %v1194
      %v1205 = vpack.c.bf16 %v1196, %v1196
      %s1206 = scalar_lea.vmem %s438, 64
      %1207 = vst.msk [vmem:[%s1206] sm:$0xf] %vm668, %v1198
      %1208 = vst.msk [vmem:[%s1206 + $0x4] sm:$0xf] %vm668, %v1199
      %1209 = vst.msk [vmem:[%s1206 + $0x8] sm:$0xf] %vm668, %v1200
      %1210 = vst.msk [vmem:[%s1206 + $0xc] sm:$0xf] %vm668, %v1201
      %1211 = vst.msk [vmem:[%s1206 + $0x10] sm:$0xf] %vm668, %v1202
      %1212 = vst.msk [vmem:[%s1206 + $0x14] sm:$0xf] %vm668, %v1203
      %1213 = vst.msk [vmem:[%s1206 + $0x18] sm:$0xf] %vm668, %v1204
      %1214 = vst.msk [vmem:[%s1206 + $0x1c] sm:$0xf] %vm668, %v1205
      %s1215 = scalar_lea.vmem %s4, 48
      %v1216 = vld [vmem:[%s1215] sm:$0xf]
      %v1217 = vld [vmem:[%s1215 + $0x4] sm:$0xf]
      %v1218 = vld [vmem:[%s1215 + $0x8] sm:$0xf]
      %v1219 = vld [vmem:[%s1215 + $0xc] sm:$0xf]
      %s1220 = scalar_lea.vmem %s5, 3
      %v1221 = vld [vmem:[%s1220] sm:$0x1]
      %v1223 = vperm.slane %v1221, 0
      %v1229 = vunpack.c.l.b16 %v1216
      %v1230 = vunpack.c.l.b16 %v1217
      %v1231 = vunpack.c.l.b16 %v1218
      %v1232 = vunpack.c.l.b16 %v1219
      %v1233 = vpack.c.b16 %v1230, %v1229
      %v1234 = vpack.c.b16 %v1232, %v1231
      %1237 = vmatpush.bf16.msra.mxu0 0
      %1238 = vmatpush.bf16.msra.mxu0 0
      %1239 = vmatpush.bf16.msra.mxu0 0
      %1240 = vmatpush.bf16.msra.mxu0 0
      %1241 = vmatpush.bf16.msra.mxu0 0
      %1242 = vmatpush.bf16.msra.mxu0 0
      %1243 = vmatpush.bf16.msra.mxu0 %v1234
      %1244 = vmatpush.bf16.msra.mxu0 %v1233
      %1245 = vmatmul.bf16.gmra.mxu0 %v620
      %v1246 = vpop.f32.mrf.mxu0
      %v1247 = vadd.f32 %v1223, %v1246
      %v1248 = vpop.f32.mrf.mxu0
      %v1249 = vadd.f32 %v1223, %v1248
      %1250 = vmatmul.bf16.gmra.mxu0 %v623
      %v1251 = vpop.f32.mrf.mxu0
      %v1252 = vadd.f32 %v1223, %v1251
      %v1253 = vpop.f32.mrf.mxu0
      %v1254 = vadd.f32 %v1223, %v1253
      %1255 = vmatmul.bf16.gmra.mxu0 %v626
      %v1256 = vpop.f32.mrf.mxu0
      %v1257 = vadd.f32 %v1223, %v1256
      %v1258 = vpop.f32.mrf.mxu0
      %v1259 = vadd.f32 %v1223, %v1258
      %1260 = vmatmul.bf16.gmra.mxu0 %v629
      %v1261 = vpop.f32.mrf.mxu0
      %v1262 = vadd.f32 %v1223, %v1261
      %v1263 = vpop.f32.mrf.mxu0
      %v1264 = vadd.f32 %v1223, %v1263
      %1265 = vdwg.mxu0
      %v1266 = vpack.c.bf16 %v1247, %v1247
      %v1267 = vpack.c.bf16 %v1249, %v1249
      %v1268 = vpack.c.bf16 %v1252, %v1252
      %v1269 = vpack.c.bf16 %v1254, %v1254
      %v1270 = vpack.c.bf16 %v1257, %v1257
      %v1271 = vpack.c.bf16 %v1259, %v1259
      %v1272 = vpack.c.bf16 %v1262, %v1262
      %v1273 = vpack.c.bf16 %v1264, %v1264
      %s1274 = scalar_lea.vmem %s428, 96
      %1275 = vst.msk [vmem:[%s1274] sm:$0xf] %vm668, %v1266
      %1276 = vst.msk [vmem:[%s1274 + $0x4] sm:$0xf] %vm668, %v1267
      %1277 = vst.msk [vmem:[%s1274 + $0x8] sm:$0xf] %vm668, %v1268
      %1278 = vst.msk [vmem:[%s1274 + $0xc] sm:$0xf] %vm668, %v1269
      %1279 = vst.msk [vmem:[%s1274 + $0x10] sm:$0xf] %vm668, %v1270
      %1280 = vst.msk [vmem:[%s1274 + $0x14] sm:$0xf] %vm668, %v1271
      %1281 = vst.msk [vmem:[%s1274 + $0x18] sm:$0xf] %vm668, %v1272
      %1282 = vst.msk [vmem:[%s1274 + $0x1c] sm:$0xf] %vm668, %v1273
      %s1283 = scalar_lea.vmem %s6, 48
      %v1284 = vld [vmem:[%s1283] sm:$0xf]
      %v1285 = vld [vmem:[%s1283 + $0x4] sm:$0xf]
      %v1286 = vld [vmem:[%s1283 + $0x8] sm:$0xf]
      %v1287 = vld [vmem:[%s1283 + $0xc] sm:$0xf]
      %s1288 = scalar_lea.vmem %s7, 3
      %v1289 = vld [vmem:[%s1288] sm:$0x1]
      %v1291 = vperm.slane %v1289, 0
      %v1297 = vunpack.c.l.b16 %v1284
      %v1298 = vunpack.c.l.b16 %v1285
      %v1299 = vunpack.c.l.b16 %v1286
      %v1300 = vunpack.c.l.b16 %v1287
      %v1301 = vpack.c.b16 %v1298, %v1297
      %v1302 = vpack.c.b16 %v1300, %v1299
      %1305 = vmatpush.bf16.msra.mxu0 0
      %1306 = vmatpush.bf16.msra.mxu0 0
      %1307 = vmatpush.bf16.msra.mxu0 0
      %1308 = vmatpush.bf16.msra.mxu0 0
      %1309 = vmatpush.bf16.msra.mxu0 0
      %1310 = vmatpush.bf16.msra.mxu0 0
      %1311 = vmatpush.bf16.msra.mxu0 %v1302
      %1312 = vmatpush.bf16.msra.mxu0 %v1301
      %1313 = vmatmul.bf16.gmra.mxu0 %v620
      %v1314 = vpop.f32.mrf.mxu0
      %v1315 = vadd.f32 %v1291, %v1314
      %v1316 = vpop.f32.mrf.mxu0
      %v1317 = vadd.f32 %v1291, %v1316
      %1318 = vmatmul.bf16.gmra.mxu0 %v623
      %v1319 = vpop.f32.mrf.mxu0
      %v1320 = vadd.f32 %v1291, %v1319
      %v1321 = vpop.f32.mrf.mxu0
      %v1322 = vadd.f32 %v1291, %v1321
      %1323 = vmatmul.bf16.gmra.mxu0 %v626
      %v1324 = vpop.f32.mrf.mxu0
      %v1325 = vadd.f32 %v1291, %v1324
      %v1326 = vpop.f32.mrf.mxu0
      %v1327 = vadd.f32 %v1291, %v1326
      %1328 = vmatmul.bf16.gmra.mxu0 %v629
      %v1329 = vpop.f32.mrf.mxu0
      %v1330 = vadd.f32 %v1291, %v1329
      %v1331 = vpop.f32.mrf.mxu0
      %v1332 = vadd.f32 %v1291, %v1331
      %1333 = vdwg.mxu0
      %v1334 = vpack.c.bf16 %v1315, %v1315
      %v1335 = vpack.c.bf16 %v1317, %v1317
      %v1336 = vpack.c.bf16 %v1320, %v1320
      %v1337 = vpack.c.bf16 %v1322, %v1322
      %v1338 = vpack.c.bf16 %v1325, %v1325
      %v1339 = vpack.c.bf16 %v1327, %v1327
      %v1340 = vpack.c.bf16 %v1330, %v1330
      %v1341 = vpack.c.bf16 %v1332, %v1332
      %s1342 = scalar_lea.vmem %s433, 96
      %1343 = vst.msk [vmem:[%s1342] sm:$0xf] %vm668, %v1334
      %1344 = vst.msk [vmem:[%s1342 + $0x4] sm:$0xf] %vm668, %v1335
      %1345 = vst.msk [vmem:[%s1342 + $0x8] sm:$0xf] %vm668, %v1336
      %1346 = vst.msk [vmem:[%s1342 + $0xc] sm:$0xf] %vm668, %v1337
      %1347 = vst.msk [vmem:[%s1342 + $0x10] sm:$0xf] %vm668, %v1338
      %1348 = vst.msk [vmem:[%s1342 + $0x14] sm:$0xf] %vm668, %v1339
      %1349 = vst.msk [vmem:[%s1342 + $0x18] sm:$0xf] %vm668, %v1340
      %1350 = vst.msk [vmem:[%s1342 + $0x1c] sm:$0xf] %vm668, %v1341
      %s1351 = scalar_lea.vmem %s8, 48
      %v1352 = vld [vmem:[%s1351] sm:$0xf]
      %v1353 = vld [vmem:[%s1351 + $0x4] sm:$0xf]
      %v1354 = vld [vmem:[%s1351 + $0x8] sm:$0xf]
      %v1355 = vld [vmem:[%s1351 + $0xc] sm:$0xf]
      %s1356 = scalar_lea.vmem %s9, 3
      %v1357 = vld [vmem:[%s1356] sm:$0x1]
      %v1359 = vperm.slane %v1357, 0
      %v1365 = vunpack.c.l.b16 %v1352
      %v1366 = vunpack.c.l.b16 %v1353
      %v1367 = vunpack.c.l.b16 %v1354
      %v1368 = vunpack.c.l.b16 %v1355
      %v1369 = vpack.c.b16 %v1366, %v1365
      %v1370 = vpack.c.b16 %v1368, %v1367
      %1373 = vmatpush.bf16.msra.mxu0 0
      %1374 = vmatpush.bf16.msra.mxu0 0
      %1375 = vmatpush.bf16.msra.mxu0 0
      %1376 = vmatpush.bf16.msra.mxu0 0
      %1377 = vmatpush.bf16.msra.mxu0 0
      %1378 = vmatpush.bf16.msra.mxu0 0
      %1379 = vmatpush.bf16.msra.mxu0 %v1370
      %1380 = vmatpush.bf16.msra.mxu0 %v1369
      %1381 = vmatmul.bf16.gmra.mxu0 %v620
      %v1382 = vpop.f32.mrf.mxu0
      %v1383 = vadd.f32 %v1359, %v1382
      %v1384 = vpop.f32.mrf.mxu0
      %v1385 = vadd.f32 %v1359, %v1384
      %1386 = vmatmul.bf16.gmra.mxu0 %v623
      %v1387 = vpop.f32.mrf.mxu0
      %v1388 = vadd.f32 %v1359, %v1387
      %v1389 = vpop.f32.mrf.mxu0
      %v1390 = vadd.f32 %v1359, %v1389
      %1391 = vmatmul.bf16.gmra.mxu0 %v626
      %v1392 = vpop.f32.mrf.mxu0
      %v1393 = vadd.f32 %v1359, %v1392
      %v1394 = vpop.f32.mrf.mxu0
      %v1395 = vadd.f32 %v1359, %v1394
      %1396 = vmatmul.bf16.gmra.mxu0 %v629
      %v1397 = vpop.f32.mrf.mxu0
      %v1398 = vadd.f32 %v1359, %v1397
      %v1399 = vpop.f32.mrf.mxu0
      %v1400 = vadd.f32 %v1359, %v1399
      %1401 = vdwg.mxu0
      %v1402 = vpack.c.bf16 %v1383, %v1383
      %v1403 = vpack.c.bf16 %v1385, %v1385
      %v1404 = vpack.c.bf16 %v1388, %v1388
      %v1405 = vpack.c.bf16 %v1390, %v1390
      %v1406 = vpack.c.bf16 %v1393, %v1393
      %v1407 = vpack.c.bf16 %v1395, %v1395
      %v1408 = vpack.c.bf16 %v1398, %v1398
      %v1409 = vpack.c.bf16 %v1400, %v1400
      %s1410 = scalar_lea.vmem %s438, 96
      %1411 = vst.msk [vmem:[%s1410] sm:$0xf] %vm668, %v1402
      %1412 = vst.msk [vmem:[%s1410 + $0x4] sm:$0xf] %vm668, %v1403
      %1413 = vst.msk [vmem:[%s1410 + $0x8] sm:$0xf] %vm668, %v1404
      %1414 = vst.msk [vmem:[%s1410 + $0xc] sm:$0xf] %vm668, %v1405
      %1415 = vst.msk [vmem:[%s1410 + $0x10] sm:$0xf] %vm668, %v1406
      %1416 = vst.msk [vmem:[%s1410 + $0x14] sm:$0xf] %vm668, %v1407
      %1417 = vst.msk [vmem:[%s1410 + $0x18] sm:$0xf] %vm668, %v1408
      %1418 = vst.msk [vmem:[%s1410 + $0x1c] sm:$0xf] %vm668, %v1409
      %p1419 = scmp.lt.s32.totalorder %s24, 1
      %s1420 = scalar_select %p1419, %s24, 1
      %s1421 = smul.addr %s1420, 32
      %s1422 = smul.addr %s1421, 4
      %s1423 = scalar_lea.vmem %s10, %s1422
      %p1424 = scmp.lt.s32.totalorder %s24, 1
      %s1425 = scalar_select %p1424, %s24, 1
      %s1426 = smul.addr %s1425, 32
      %s1427 = smul.addr %s1426, 4
      %s1428 = scalar_lea.vmem %s11, %s1427
      %p1429 = scmp.lt.s32.totalorder %s24, 1
      %s1430 = scalar_select %p1429, %s24, 1
      %s1431 = smul.addr %s1430, 32
      %s1432 = smul.addr %s1431, 4
      %s1433 = scalar_lea.vmem %s12, %s1432
      // Predicated region
      $region61: #{tpu_custom_call.1} parent=59 // pred_check
        %p1434 = pneg %p257
      $region62: #{tpu_custom_call.1} parent=59 // pred_check_branch
        %1436 = sbr.rel (%p1434) target = $region64
      $region63: #{tpu_custom_call.1} parent=59 // pred_region
        _
      $region64: #{tpu_custom_call.1} parent=59 // pred_fallthru
        _
      // Predicated region
      $region65: #{tpu_custom_call.1} parent=59 // pred_check
        %p1437 = pneg %p283
      $region66: #{tpu_custom_call.1} parent=59 // pred_check_branch
        %1439 = sbr.rel (%p1437) target = $region68
      $region67: #{tpu_custom_call.1} parent=59 // pred_region
        _
      $region68: #{tpu_custom_call.1} parent=59 // pred_fallthru
        _
      // Predicated region
      $region69: #{tpu_custom_call.1} parent=59 // pred_check
        %p1440 = pneg %p309
      $region70: #{tpu_custom_call.1} parent=59 // pred_check_branch
        %1442 = sbr.rel (%p1440) target = $region72
      $region71: #{tpu_custom_call.1} parent=59 // pred_region
        _
      $region72: #{tpu_custom_call.1} parent=59 // pred_fallthru
        _
    $region60: #{tpu_custom_call.1} parent=5 // pred_fallthru
      _
    %p1443 = scmp.le.s32.totalorder 2, %s19
    // Predicated region
    $region73: #{tpu_custom_call.1} parent=5 // pred_check
      %p1444 = pneg %p1443
    $region74: #{tpu_custom_call.1} parent=5 // pred_check_branch
      %1446 = sbr.rel (%p1444) target = $region76
    $region75: #{tpu_custom_call.1} parent=5 // pred_region
      %s1447 = ssub.s32 %s19, 2
      // Predicated region
      $region77: #{tpu_custom_call.1} parent=75 // pred_check
        %p1448 = pneg %p263
      $region78: #{tpu_custom_call.1} parent=75 // pred_check_branch
        %1450 = sbr.rel (%p1448) target = $region80
      $region79: #{tpu_custom_call.1} parent=75 // pred_region
        %p1451 = scmp.lt.s32.totalorder %s25, 1
        %s1452 = scalar_select %p1451, %s25, 1
        %s1453 = smul.addr %s1452, 32
        %s1454 = smul.addr %s1453, 4
        %s1455 = scalar_lea.vmem %s10, %s1454
      $region80: #{tpu_custom_call.1} parent=75 // pred_fallthru
        _
      // Predicated region
      $region81: #{tpu_custom_call.1} parent=75 // pred_check
        %p1456 = pneg %p289
      $region82: #{tpu_custom_call.1} parent=75 // pred_check_branch
        %1458 = sbr.rel (%p1456) target = $region84
      $region83: #{tpu_custom_call.1} parent=75 // pred_region
        %p1459 = scmp.lt.s32.totalorder %s25, 1
        %s1460 = scalar_select %p1459, %s25, 1
        %s1461 = smul.addr %s1460, 32
        %s1462 = smul.addr %s1461, 4
        %s1463 = scalar_lea.vmem %s11, %s1462
      $region84: #{tpu_custom_call.1} parent=75 // pred_fallthru
        _
      // Predicated region
      $region85: #{tpu_custom_call.1} parent=75 // pred_check
        %p1464 = pneg %p315
      $region86: #{tpu_custom_call.1} parent=75 // pred_check_branch
        %1466 = sbr.rel (%p1464) target = $region88
      $region87: #{tpu_custom_call.1} parent=75 // pred_region
        %p1467 = scmp.lt.s32.totalorder %s25, 1
        %s1468 = scalar_select %p1467, %s25, 1
        %s1469 = smul.addr %s1468, 32
        %s1470 = smul.addr %s1469, 4
        %s1471 = scalar_lea.vmem %s12, %s1470
      $region88: #{tpu_custom_call.1} parent=75 // pred_fallthru
        _
    $region76: #{tpu_custom_call.1} parent=5 // pred_fallthru
      _
  $region6: #{tpu_custom_call.1} parent=0 // loop_footer
    %s23 = sadd.s32 1, %s19
  $region7: #{tpu_custom_call.1} parent=0 // loop_footer_branch
    %18 = sbr.rel target = $region3
  $region8: #{tpu_custom_call.1} parent=0 // loop_exit
    _

</llo_original>
